<compile_context>
chip_gen: v7x
topology: tpu7x:2x2x1
jax: 0.10.0
libtpu: 0.0.40
codegen_flags: <defaults>
</compile_context>

<pallas_src>
import functools

import jax
import jax.numpy as jnp
from jax.experimental import pallas as pl
from jax.experimental.pallas import tpu as pltpu

M_FEAT = 500     # self.M
M_PAD = 512      # lane-dense padding of M
L_DIM = 128      # self.L
N_CLASSES = 2    # classifier output width
C_PAD = 128      # lane-dense padding of the classifier output

TN_CAP = 512     # row-tile cap (was 128): Wf streamed once for bags <= 512 tiles
TK_CAP = 2048    # K-reduction tile cap (was 1024): amortizes per-step overhead


def _round_up(v, m):
    return (v + m - 1) // m * m


def _pick_tk(d_pad):
    """Largest multiple of 128 that divides d_pad and is <= TK_CAP."""
    best = 128
    t = 128
    while t <= min(TK_CAP, d_pad):
        if d_pad % t == 0:
            best = t
        t += 128
    return best


# ----------------------------------------------------------------------------
# Fused kernel: feature matmul (tiled over rows x D) + gated attention scores
#               + online softmax over tiles + attention pooling + classifier.
# grid = (n_blocks, k_blocks); k (the D reduction) is the inner axis.
# ----------------------------------------------------------------------------
def _mil_fused_kernel(x_ref, wf_ref, bf_ref, wv_ref, bv_ref, wu_ref, bu_ref,
                      ww_ref, bw_ref, wc_ref, bc_ref, out_ref,
                      h_acc, m_sc, l_sc, macc, *, n_valid, tn):
    n = pl.program_id(0)
    k = pl.program_id(1)
    nk = pl.num_programs(1)
    nn = pl.num_programs(0)

    # ---- init online-softmax state once, at the very first grid step --------
    @pl.when(jnp.logical_and(n == 0, k == 0))
    def _():
        m_sc[...] = jnp.full_like(m_sc, -jnp.inf)
        l_sc[...] = jnp.zeros_like(l_sc)
        macc[...] = jnp.zeros_like(macc)

    # ---- per-row-block feature accumulator ----------------------------------
    @pl.when(k == 0)
    def _():
        h_acc[...] = jnp.zeros_like(h_acc)

    # bf16 MXU matmul, f32 accumulation.
    h_acc[...] += jnp.dot(x_ref[...], wf_ref[...],
                          preferred_element_type=jnp.float32)

    # ---- epilogue for this row block: attention score + online softmax ------
    @pl.when(k == nk - 1)
    def _():
        h = h_acc[...] + bf_ref[...]                               # (TN, 512) f32
        h_bf = h.astype(jnp.bfloat16)

        av = jnp.tanh(jnp.dot(h_bf, wv_ref[...],
                              preferred_element_type=jnp.float32) + bv_ref[...])
        au = jax.nn.sigmoid(jnp.dot(h_bf, wu_ref[...],
                                    preferred_element_type=jnp.float32) + bu_ref[...])
        gated = av * au                                            # (TN, 128) f32

        # attention_weights: Linear(L, 1) as broadcast-mul + lane reduction.
        scores = jnp.sum(gated * ww_ref[...], axis=1, keepdims=True) + bw_ref[...]

        # mask rows that are pure padding (row index >= number of real tiles)
        row = n * tn + jax.lax.broadcasted_iota(jnp.int32, (tn, 1), 0)
        scores = jnp.where(row < n_valid, scores, -jnp.inf)

        # online (streaming) softmax over all tiles + weighted-H accumulation
        blk_max = jnp.max(scores, axis=0, keepdims=True)           # (1, 1)
        m_new = jnp.maximum(m_sc[...], blk_max)
        # guard against (-inf) - (-inf) = NaN (only possible if the first block
        # processed had zero valid rows — cheap insurance for future reorders).
        alpha = jnp.where(m_sc[...] == -jnp.inf, 0.0,
                          jnp.exp(m_sc[...] - m_new))
        p = jnp.exp(scores - m_new)                                # (TN, 1), 0 on pads
        l_sc[...] = alpha * l_sc[...] + jnp.sum(p, axis=0, keepdims=True)
        macc[...] = alpha * macc[...] + jnp.sum(p * h, axis=0, keepdims=True)
        m_sc[...] = m_new

    # ---- final epilogue: normalize pooled features, run classifier ----------
    @pl.when(jnp.logical_and(n == nn - 1, k == nk - 1))
    def _():
        m_pool = macc[...] / l_sc[...]                             # (1, 512) f32, exact
        out_ref[...] = (jnp.dot(m_pool.astype(jnp.bfloat16), wc_ref[...],
                                preferred_element_type=jnp.float32) + bc_ref[...])


# ----------------------------------------------------------------------------
# One-time weight preparation (OUTSIDE the per-forward path): pad to
# lane-dense shapes and cast matmul weights to bf16 so the forward pass does
# no per-call padding/casting copies of the weights.
# ----------------------------------------------------------------------------
def prepare_params(params, D):
    D_pad = _round_up(D, 128)
    wf = jnp.zeros((D_pad, M_PAD), jnp.bfloat16).at[:D, :].set(
        params["wf"].astype(jnp.bfloat16))
    return dict(
        wf=wf,
        bf=params["bf"],
        wv=params["wv"].astype(jnp.bfloat16),
        bv=params["bv"],
        wu=params["wu"].astype(jnp.bfloat16),
        bu=params["bu"],
        ww=params["ww"],
        bw=params["bw"],
        wc=params["wc"].astype(jnp.bfloat16),
        bc=params["bc"],
    )


# ----------------------------------------------------------------------------
# Wrapper: layout plumbing (flatten / cast, pad only if unavoidable) + call.
# ----------------------------------------------------------------------------
def mil_gated_attention_forward(x, prep):
    # The torch module does x.squeeze(0): a single bag of `tiles` tiles.
    assert x.shape[0] == 1, "module semantics: single bag (squeeze(0))"
    _, T, C, S, _ = x.shape
    N = T
    D = C * S * S
    D_pad = prep["wf"].shape[0]              # multiple of 128, fixed at prep time

    # Tile sizes.  TN up to 512 rows (single block for typical MIL bags, so Wf
    # is streamed exactly once); TK a multiple of 128 dividing D_pad, up to 2048.
    TN = min(TN_CAP, _round_up(N, 8))
    N_pad = _round_up(N, TN)
    TK = _pick_tk(D_pad)
    n_blocks = N_pad // TN
    k_blocks = D_pad // TK

    # Flatten each tile row-major (C, H, W) -> lane axis; cast to bf16.
    # No padding copy in the common case (N % TN == 0 and D % 128 == 0).
    x_flat = x.reshape(N, D).astype(jnp.bfloat16)
    if N_pad == N and D_pad == D:
        x_p = x_flat
    else:
        x_p = jnp.zeros((N_pad, D_pad), jnp.bfloat16).at[:N, :D].set(x_flat)

    kernel = functools.partial(_mil_fused_kernel, n_valid=N, tn=TN)

    # VMEM budget at the largest tiles (TN=512, TK=2048):
    #   2*(TN*TK + TK*512)*2B pipelined x/wf  ~ 8 MiB
    #   TN*512*4B h_acc                       ~ 1 MiB
    #   invariant weights (double-buffered)   ~ 1.5 MiB
    # => ~11 MiB; a 48 MiB limit never constrains tiling and fits v7x's 64 MiB.
    out_pad = pl.pallas_call(
        kernel,
        out_shape=jax.ShapeDtypeStruct((1, C_PAD), jnp.float32),
        grid_spec=pltpu.PrefetchScalarGridSpec(
            num_scalar_prefetch=0,
            grid=(n_blocks, k_blocks),
            in_specs=[
                pl.BlockSpec((TN, TK), lambda n, k: (n, k)),        # x
                pl.BlockSpec((TK, M_PAD), lambda n, k: (k, 0)),     # wf
                pl.BlockSpec((1, M_PAD), lambda n, k: (0, 0)),      # bf
                pl.BlockSpec((M_PAD, L_DIM), lambda n, k: (0, 0)),  # wv
                pl.BlockSpec((1, L_DIM), lambda n, k: (0, 0)),      # bv
                pl.BlockSpec((M_PAD, L_DIM), lambda n, k: (0, 0)),  # wu
                pl.BlockSpec((1, L_DIM), lambda n, k: (0, 0)),      # bu
                pl.BlockSpec((1, L_DIM), lambda n, k: (0, 0)),      # ww
                pl.BlockSpec((1, 1), lambda n, k: (0, 0)),          # bw
                pl.BlockSpec((M_PAD, C_PAD), lambda n, k: (0, 0)),  # wc (bf16)
                pl.BlockSpec((1, C_PAD), lambda n, k: (0, 0)),      # bc
            ],
            out_specs=pl.BlockSpec((1, C_PAD), lambda n, k: (0, 0)),
            scratch_shapes=[
                pltpu.VMEM((TN, M_PAD), jnp.float32),   # h_acc
                pltpu.VMEM((1, 1), jnp.float32),        # running max
                pltpu.VMEM((1, 1), jnp.float32),        # running denom
                pltpu.VMEM((1, M_PAD), jnp.float32),    # running weighted-H sum
            ],
        ),
        compiler_params=pltpu.CompilerParams(
            # both grid axes carry scratch state -> "arbitrary"
            # TODO(synk): v7x megacore (row axis "parallel" + per-core partials)
            dimension_semantics=("arbitrary", "arbitrary"),
            vmem_limit_bytes=48 * 1024 * 1024,
        ),
    )(x_p, prep["wf"], prep["bf"], prep["wv"], prep["bv"], prep["wu"],
      prep["bu"], prep["ww"], prep["bw"], prep["wc"], prep["bc"])

    return out_pad[:, :N_CLASSES]                                   # (1, 2)


# ----------------------------------------------------------------------------
# Pure-JAX reference with the same (bf16-matmul / f32-accumulate) precision.
# ----------------------------------------------------------------------------
def _reference(x, params):
    _, T, C, S, _ = x.shape
    N, D = T, C * S * S
    xf = x.reshape(N, D).astype(jnp.bfloat16)
    H = jnp.dot(xf, params["wf"].astype(jnp.bfloat16),
                preferred_element_type=jnp.float32) + params["bf"]   # (N, 512)
    hb = H.astype(jnp.bfloat16)
    av = jnp.tanh(jnp.dot(hb, params["wv"].astype(jnp.bfloat16),
                          preferred_element_type=jnp.float32) + params["bv"])
    au = jax.nn.sigmoid(jnp.dot(hb, params["wu"].astype(jnp.bfloat16),
                                preferred_element_type=jnp.float32) + params["bu"])
    scores = jnp.sum(av * au * params["ww"], axis=1) + params["bw"][0, 0]  # (N,)
    A = jax.nn.softmax(scores)                                       # (N,)
    Mp = A @ H                                                       # (512,)
    out = jnp.dot(Mp.astype(jnp.bfloat16)[None, :],
                  params["wc"].astype(jnp.bfloat16),
                  preferred_element_type=jnp.float32) + params["bc"]  # (1, 128)
    return out[:, :N_CLASSES]                                        # (1, 2)


def _init_params(key, D):
    # torch.nn.Linear-style init U(-1/sqrt(fan_in), 1/sqrt(fan_in)); padded
    # regions (cols 500..512, classifier cols 2..128) are ZERO so lane-dense
    # padding never contaminates the math.
    ks = jax.random.split(key, 10)

    def u(k, shape, fan_in):
        b = 1.0 / float(fan_in) ** 0.5
        return jax.random.uniform(k, shape, jnp.float32, -b, b)

    wf = jnp.zeros((D, M_PAD), jnp.float32).at[:, :M_FEAT].set(u(ks[0], (D, M_FEAT), D))
    bf = jnp.zeros((1, M_PAD), jnp.float32).at[:, :M_FEAT].set(u(ks[1], (1, M_FEAT), D))
    wv = jnp.zeros((M_PAD, L_DIM), jnp.float32).at[:M_FEAT].set(
        u(ks[2], (M_FEAT, L_DIM), M_FEAT))
    bv = u(ks[3], (1, L_DIM), M_FEAT)
    wu = jnp.zeros((M_PAD, L_DIM), jnp.float32).at[:M_FEAT].set(
        u(ks[4], (M_FEAT, L_DIM), M_FEAT))
    bu = u(ks[5], (1, L_DIM), M_FEAT)
    ww = u(ks[6], (1, L_DIM), L_DIM)          # attention_weights weight (1, 128)
    bw = u(ks[7], (1, 1), L_DIM)
    wc = jnp.zeros((M_PAD, C_PAD), jnp.float32).at[:M_FEAT, :N_CLASSES].set(
        u(ks[8], (M_FEAT, N_CLASSES), M_FEAT))
    bc = jnp.zeros((1, C_PAD), jnp.float32).at[:, :N_CLASSES].set(
        u(ks[9], (1, N_CLASSES), M_FEAT))
    return dict(wf=wf, bf=bf, wv=wv, bv=bv, wu=wu, bu=bu, ww=ww, bw=bw, wc=wc, bc=bc)


if __name__ == "__main__":
    key = jax.random.PRNGKey(0)
    k_param, k_x = jax.random.split(key)

    num_bags, tiles, chans, tile_size = 1, 16, 3, 16      # small shapes
    D = chans * tile_size * tile_size                     # 768 (multiple of 128)

    params = _init_params(k_param, D)
    prep = prepare_params(params, D)                      # one-time pad/cast

    x = jax.random.normal(
        k_x, (num_bags, tiles, chans, tile_size, tile_size), jnp.float32)

    fwd = jax.jit(functools.partial(mil_gated_attention_forward, prep=prep))
    out = fwd(x)
    jax.block_until_ready(out)

    # sanity check against a pure-JAX reference with the same precision path
    ref = _reference(x, params)
    assert out.shape == (1, N_CLASSES)
    assert jnp.allclose(out, ref, atol=2e-2, rtol=2e-2), (out, ref)

    print("KERNEL_OK")
</pallas_src>

<mosaic_0001>
module attributes {stable_mosaic.version = 11 : i64} {
  func.func @_mil_fused_kernel(%arg0: i32, %arg1: i32, %arg2: memref<16x768xbf16, #tpu.memory_space<vmem>>, %arg3: memref<768x512xbf16, #tpu.memory_space<vmem>>, %arg4: memref<1x512xf32, #tpu.memory_space<vmem>>, %arg5: memref<512x128xbf16, #tpu.memory_space<vmem>>, %arg6: memref<1x128xf32, #tpu.memory_space<vmem>>, %arg7: memref<512x128xbf16, #tpu.memory_space<vmem>>, %arg8: memref<1x128xf32, #tpu.memory_space<vmem>>, %arg9: memref<1x128xf32, #tpu.memory_space<vmem>>, %arg10: memref<1x1xf32, #tpu.memory_space<vmem>>, %arg11: memref<512x128xbf16, #tpu.memory_space<vmem>>, %arg12: memref<1x128xf32, #tpu.memory_space<vmem>>, %arg13: memref<1x128xf32, #tpu.memory_space<vmem>>, %arg14: memref<16x512xf32, #tpu.memory_space<vmem>>, %arg15: memref<1x1xf32, #tpu.memory_space<vmem>>, %arg16: memref<1x1xf32, #tpu.memory_space<vmem>>, %arg17: memref<1x512xf32, #tpu.memory_space<vmem>>) attributes {dimension_semantics = [#tpu.dimension_semantics<arbitrary>, #tpu.dimension_semantics<arbitrary>], iteration_bounds = array<i64: 1, 1>, scalar_prefetch = 0 : i64, scratch_operands = 4 : i64, tpu.core_type = #tpu.core_type<tc>, window_params = [{transform_indices = @transform_0, window_bounds = array<i64: 16, 768>}, {transform_indices = @transform_1, window_bounds = array<i64: 768, 512>}, {pipeline_mode = #tpu.pipeline_mode<synchronous>, transform_indices = @transform_2, window_bounds = array<i64: 1, 512>}, {pipeline_mode = #tpu.pipeline_mode<synchronous>, transform_indices = @transform_3, window_bounds = array<i64: 512, 128>}, {pipeline_mode = #tpu.pipeline_mode<synchronous>, transform_indices = @transform_4, window_bounds = array<i64: 1, 128>}, {pipeline_mode = #tpu.pipeline_mode<synchronous>, transform_indices = @transform_5, window_bounds = array<i64: 512, 128>}, {pipeline_mode = #tpu.pipeline_mode<synchronous>, transform_indices = @transform_6, window_bounds = array<i64: 1, 128>}, {pipeline_mode = #tpu.pipeline_mode<synchronous>, transform_indices = @transform_7, window_bounds = array<i64: 1, 128>}, {pipeline_mode = #tpu.pipeline_mode<synchronous>, transform_indices = @transform_8, window_bounds = array<i64: 1, 1>}, {pipeline_mode = #tpu.pipeline_mode<synchronous>, transform_indices = @transform_9, window_bounds = array<i64: 512, 128>}, {pipeline_mode = #tpu.pipeline_mode<synchronous>, transform_indices = @transform_10, window_bounds = array<i64: 1, 128>}, {pipeline_mode = #tpu.pipeline_mode<synchronous>, transform_indices = @transform_11, window_bounds = array<i64: 1, 128>}]} {
    %c0_i32 = arith.constant 0 : i32
    %0 = arith.cmpi eq, %arg0, %c0_i32 : i32
    %c0_i32_0 = arith.constant 0 : i32
    %1 = arith.cmpi eq, %arg1, %c0_i32_0 : i32
    %2 = arith.andi %0, %1 : i1
    %3 = arith.extui %2 : i1 to i32
    %c0_i32_1 = arith.constant 0 : i32
    %4 = arith.cmpi ne, %3, %c0_i32_1 : i32
    scf.if %4 {
      %cst_16 = arith.constant 0xFF800000 : f32
      %22 = vector.broadcast %cst_16 : f32 to vector<1x1xf32>
      %c0_17 = arith.constant 0 : index
      %c0_18 = arith.constant 0 : index
      %23 = vector.load %arg15[%c0_17, %c0_18] : memref<1x1xf32, #tpu.memory_space<vmem>>, vector<1x1xf32>
      tpu.vector_store %arg15[%c0_17, %c0_18], %22 {strides = array<i32>} : memref<1x1xf32, #tpu.memory_space<vmem>>, vector<1x1xf32>,
      %cst_19 = arith.constant 0.000000e+00 : f32
      %24 = vector.broadcast %cst_19 : f32 to vector<1x1xf32>
      %c0_20 = arith.constant 0 : index
      %c0_21 = arith.constant 0 : index
      %25 = vector.load %arg16[%c0_20, %c0_21] : memref<1x1xf32, #tpu.memory_space<vmem>>, vector<1x1xf32>
      tpu.vector_store %arg16[%c0_20, %c0_21], %24 {strides = array<i32>} : memref<1x1xf32, #tpu.memory_space<vmem>>, vector<1x1xf32>,
      %cst_22 = arith.constant 0.000000e+00 : f32
      %26 = vector.broadcast %cst_22 : f32 to vector<1x512xf32>
      %c0_23 = arith.constant 0 : index
      %c0_24 = arith.constant 0 : index
      %27 = vector.load %arg17[%c0_23, %c0_24] : memref<1x512xf32, #tpu.memory_space<vmem>>, vector<1x512xf32>
      tpu.vector_store %arg17[%c0_23, %c0_24], %26 {strides = array<i32>} : memref<1x512xf32, #tpu.memory_space<vmem>>, vector<1x512xf32>,
    } else {
    }
    %c0_i32_2 = arith.constant 0 : i32
    %5 = arith.cmpi eq, %arg1, %c0_i32_2 : i32
    %6 = arith.extui %5 : i1 to i32
    %c0_i32_3 = arith.constant 0 : i32
    %7 = arith.cmpi ne, %6, %c0_i32_3 : i32
    scf.if %7 {
      %cst_16 = arith.constant 0.000000e+00 : f32
      %22 = vector.broadcast %cst_16 : f32 to vector<16x512xf32>
      %c0_17 = arith.constant 0 : index
      %c0_18 = arith.constant 0 : index
      %23 = vector.load %arg14[%c0_17, %c0_18] : memref<16x512xf32, #tpu.memory_space<vmem>>, vector<16x512xf32>
      tpu.vector_store %arg14[%c0_17, %c0_18], %22 {strides = array<i32>} : memref<16x512xf32, #tpu.memory_space<vmem>>, vector<16x512xf32>,
    } else {
    }
    %c0 = arith.constant 0 : index
    %c0_4 = arith.constant 0 : index
    %8 = vector.load %arg14[%c0, %c0_4] : memref<16x512xf32, #tpu.memory_space<vmem>>, vector<16x512xf32>
    %c0_5 = arith.constant 0 : index
    %c0_6 = arith.constant 0 : index
    %9 = vector.load %arg2[%c0_5, %c0_6] : memref<16x768xbf16, #tpu.memory_space<vmem>>, vector<16x768xbf16>
    %c0_7 = arith.constant 0 : index
    %c0_8 = arith.constant 0 : index
    %10 = vector.load %arg3[%c0_7, %c0_8] : memref<768x512xbf16, #tpu.memory_space<vmem>>, vector<768x512xbf16>
    %cst = arith.constant dense<0.000000e+00> : vector<16x512xf32>
    %11 = tpu.matmul %9, %10, %cst {dimension_numbers = #tpu.dot_dimension_numbers<[1], [0], [0], [1], [0, 0, 1, 1], [], []>} : vector<16x768xbf16>, vector<768x512xbf16>, vector<16x512xf32> -> vector<16x512xf32>
    %12 = arith.addf %8, %11 : vector<16x512xf32>
    %c0_9 = arith.constant 0 : index
    %c0_10 = arith.constant 0 : index
    %13 = vector.load %arg14[%c0_9, %c0_10] : memref<16x512xf32, #tpu.memory_space<vmem>>, vector<16x512xf32>
    tpu.vector_store %arg14[%c0_9, %c0_10], %12 {strides = array<i32>} : memref<16x512xf32, #tpu.memory_space<vmem>>, vector<16x512xf32>,
    %c0_i32_11 = arith.constant 0 : i32
    %14 = arith.cmpi eq, %arg1, %c0_i32_11 : i32
    %15 = arith.extui %14 : i1 to i32
    %c0_i32_12 = arith.constant 0 : i32
    %16 = arith.cmpi ne, %15, %c0_i32_12 : i32
    scf.if %16 {
      %c0_16 = arith.constant 0 : index
      %c0_17 = arith.constant 0 : index
      %22 = vector.load %arg14[%c0_16, %c0_17] : memref<16x512xf32, #tpu.memory_space<vmem>>, vector<16x512xf32>
      %c0_18 = arith.constant 0 : index
      %c0_19 = arith.constant 0 : index
      %23 = vector.load %arg4[%c0_18, %c0_19] : memref<1x512xf32, #tpu.memory_space<vmem>>, vector<1x512xf32>
      %24 = vector.broadcast %23 : vector<1x512xf32> to vector<16x512xf32>
      %25 = arith.addf %22, %24 : vector<16x512xf32>
      %26 = arith.truncf %25 : vector<16x512xf32> to vector<16x512xbf16>
      %c0_20 = arith.constant 0 : index
      %c0_21 = arith.constant 0 : index
      %27 = vector.load %arg5[%c0_20, %c0_21] : memref<512x128xbf16, #tpu.memory_space<vmem>>, vector<512x128xbf16>
      %cst_22 = arith.constant dense<0.000000e+00> : vector<16x128xf32>
      %28 = tpu.matmul %26, %27, %cst_22 {dimension_numbers = #tpu.dot_dimension_numbers<[1], [0], [0], [1], [0, 0, 1, 1], [], []>} : vector<16x512xbf16>, vector<512x128xbf16>, vector<16x128xf32> -> vector<16x128xf32>
      %c0_23 = arith.constant 0 : index
      %c0_24 = arith.constant 0 : index
      %29 = vector.load %arg6[%c0_23, %c0_24] : memref<1x128xf32, #tpu.memory_space<vmem>>, vector<1x128xf32>
      %30 = vector.broadcast %29 : vector<1x128xf32> to vector<16x128xf32>
      %31 = arith.addf %28, %30 : vector<16x128xf32>
      %32 = math.tanh %31 : vector<16x128xf32>
      %c0_25 = arith.constant 0 : index
      %c0_26 = arith.constant 0 : index
      %33 = vector.load %arg7[%c0_25, %c0_26] : memref<512x128xbf16, #tpu.memory_space<vmem>>, vector<512x128xbf16>
      %cst_27 = arith.constant dense<0.000000e+00> : vector<16x128xf32>
      %34 = tpu.matmul %26, %33, %cst_27 {dimension_numbers = #tpu.dot_dimension_numbers<[1], [0], [0], [1], [0, 0, 1, 1], [], []>} : vector<16x512xbf16>, vector<512x128xbf16>, vector<16x128xf32> -> vector<16x128xf32>
      %c0_28 = arith.constant 0 : index
      %c0_29 = arith.constant 0 : index
      %35 = vector.load %arg8[%c0_28, %c0_29] : memref<1x128xf32, #tpu.memory_space<vmem>>, vector<1x128xf32>
      %36 = vector.broadcast %35 : vector<1x128xf32> to vector<16x128xf32>
      %37 = arith.addf %34, %36 : vector<16x128xf32>
      %38 = arith.negf %37 : vector<16x128xf32>
      %39 = math.exp %38 : vector<16x128xf32>
      %cst_30 = arith.constant 1.000000e+00 : f32
      %40 = vector.broadcast %cst_30 : f32 to vector<16x128xf32>
      %41 = arith.addf %40, %39 : vector<16x128xf32>
      %42 = arith.divf %40, %41 : vector<16x128xf32>
      %43 = arith.mulf %32, %42 : vector<16x128xf32>
      %c0_31 = arith.constant 0 : index
      %c0_32 = arith.constant 0 : index
      %44 = vector.load %arg9[%c0_31, %c0_32] : memref<1x128xf32, #tpu.memory_space<vmem>>, vector<1x128xf32>
      %45 = vector.broadcast %44 : vector<1x128xf32> to vector<16x128xf32>
      %46 = arith.mulf %43, %45 : vector<16x128xf32>
      %cst_33 = arith.constant dense<0.000000e+00> : vector<16xf32>
      %47 = vector.multi_reduction <add>, %46, %cst_33 [1] : vector<16x128xf32> to vector<16xf32>
      %48 = vector.shape_cast %47 : vector<16xf32> to vector<16x1xf32>
      %c0_34 = arith.constant 0 : index
      %c0_35 = arith.constant 0 : index
      %49 = vector.load %arg10[%c0_34, %c0_35] : memref<1x1xf32, #tpu.memory_space<vmem>>, vector<1x1xf32>
      %50 = vector.broadcast %49 : vector<1x1xf32> to vector<16x1xf32>
      %51 = arith.addf %48, %50 : vector<16x1xf32>
      %c16_i32 = arith.constant 16 : i32
      %52 = arith.muli %arg0, %c16_i32 : i32
      %53 = tpu.iota {dimensions = array<i32: 0>} : vector<16x1xi32>
      %54 = vector.broadcast %52 : i32 to vector<16x1xi32>
      %55 = arith.addi %54, %53 : vector<16x1xi32>
      %c16_i32_36 = arith.constant 16 : i32
      %56 = vector.broadcast %c16_i32_36 : i32 to vector<16x1xi32>
      %57 = arith.cmpi slt, %55, %56 : vector<16x1xi32>
      %cst_37 = arith.constant 0xFF800000 : f32
      %58 = vector.broadcast %cst_37 : f32 to vector<16x1xf32>
      %59 = arith.select %57, %51, %58 : vector<16x1xi1>, vector<16x1xf32>
      %cst_38 = arith.constant dense<0xFF800000> : vector<1xf32>
      %60 = vector.multi_reduction <maximumf>, %59, %cst_38 [0] : vector<16x1xf32> to vector<1xf32>
      %61 = vector.shape_cast %60 : vector<1xf32> to vector<1x1xf32>
      %c0_39 = arith.constant 0 : index
      %c0_40 = arith.constant 0 : index
      %62 = vector.load %arg15[%c0_39, %c0_40] : memref<1x1xf32, #tpu.memory_space<vmem>>, vector<1x1xf32>
      %63 = arith.maximumf %62, %61 : vector<1x1xf32>
      %c0_41 = arith.constant 0 : index
      %c0_42 = arith.constant 0 : index
      %64 = vector.load %arg15[%c0_41, %c0_42] : memref<1x1xf32, #tpu.memory_space<vmem>>, vector<1x1xf32>
      %cst_43 = arith.constant 0xFF800000 : f32
      %65 = vector.broadcast %cst_43 : f32 to vector<1x1xf32>
      %66 = arith.cmpf oeq, %64, %65 : vector<1x1xf32>
      %c0_44 = arith.constant 0 : index
      %c0_45 = arith.constant 0 : index
      %67 = vector.load %arg15[%c0_44, %c0_45] : memref<1x1xf32, #tpu.memory_space<vmem>>, vector<1x1xf32>
      %68 = arith.subf %67, %63 : vector<1x1xf32>
      %69 = math.exp %68 : vector<1x1xf32>
      %cst_46 = arith.constant 0.000000e+00 : f32
      %70 = vector.broadcast %cst_46 : f32 to vector<1x1xf32>
      %71 = arith.select %66, %70, %69 : vector<1x1xi1>, vector<1x1xf32>
      %72 = vector.broadcast %63 : vector<1x1xf32> to vector<16x1xf32>
      %73 = arith.subf %59, %72 : vector<16x1xf32>
      %74 = math.exp %73 : vector<16x1xf32>
      %c0_47 = arith.constant 0 : index
      %c0_48 = arith.constant 0 : index
      %75 = vector.load %arg16[%c0_47, %c0_48] : memref<1x1xf32, #tpu.memory_space<vmem>>, vector<1x1xf32>
      %76 = arith.mulf %71, %75 : vector<1x1xf32>
      %cst_49 = arith.constant dense<0.000000e+00> : vector<1xf32>
      %77 = vector.multi_reduction <add>, %74, %cst_49 [0] : vector<16x1xf32> to vector<1xf32>
      %78 = vector.shape_cast %77 : vector<1xf32> to vector<1x1xf32>
      %79 = arith.addf %76, %78 : vector<1x1xf32>
      %c0_50 = arith.constant 0 : index
      %c0_51 = arith.constant 0 : index
      %80 = vector.load %arg16[%c0_50, %c0_51] : memref<1x1xf32, #tpu.memory_space<vmem>>, vector<1x1xf32>
      tpu.vector_store %arg16[%c0_50, %c0_51], %79 {strides = array<i32>} : memref<1x1xf32, #tpu.memory_space<vmem>>, vector<1x1xf32>,
      %c0_52 = arith.constant 0 : index
      %c0_53 = arith.constant 0 : index
      %81 = vector.load %arg17[%c0_52, %c0_53] : memref<1x512xf32, #tpu.memory_space<vmem>>, vector<1x512xf32>
      %82 = vector.broadcast %71 : vector<1x1xf32> to vector<1x512xf32>
      %83 = arith.mulf %82, %81 : vector<1x512xf32>
      %84 = vector.broadcast %74 : vector<16x1xf32> to vector<16x512xf32>
      %85 = arith.mulf %84, %25 : vector<16x512xf32>
      %cst_54 = arith.constant dense<0.000000e+00> : vector<512xf32>
      %86 = vector.multi_reduction <add>, %85, %cst_54 [0] : vector<16x512xf32> to vector<512xf32>
      %87 = vector.shape_cast %86 : vector<512xf32> to vector<1x512xf32>
      %88 = arith.addf %83, %87 : vector<1x512xf32>
      %c0_55 = arith.constant 0 : index
      %c0_56 = arith.constant 0 : index
      %89 = vector.load %arg17[%c0_55, %c0_56] : memref<1x512xf32, #tpu.memory_space<vmem>>, vector<1x512xf32>
      tpu.vector_store %arg17[%c0_55, %c0_56], %88 {strides = array<i32>} : memref<1x512xf32, #tpu.memory_space<vmem>>, vector<1x512xf32>,
      %c0_57 = arith.constant 0 : index
      %c0_58 = arith.constant 0 : index
      %90 = vector.load %arg15[%c0_57, %c0_58] : memref<1x1xf32, #tpu.memory_space<vmem>>, vector<1x1xf32>
      tpu.vector_store %arg15[%c0_57, %c0_58], %63 {strides = array<i32>} : memref<1x1xf32, #tpu.memory_space<vmem>>, vector<1x1xf32>,
    } else {
    }
    %c0_i32_13 = arith.constant 0 : i32
    %17 = arith.cmpi eq, %arg0, %c0_i32_13 : i32
    %c0_i32_14 = arith.constant 0 : i32
    %18 = arith.cmpi eq, %arg1, %c0_i32_14 : i32
    %19 = arith.andi %17, %18 : i1
    %20 = arith.extui %19 : i1 to i32
    %c0_i32_15 = arith.constant 0 : i32
    %21 = arith.cmpi ne, %20, %c0_i32_15 : i32
    scf.if %21 {
      %c0_16 = arith.constant 0 : index
      %c0_17 = arith.constant 0 : index
      %22 = vector.load %arg17[%c0_16, %c0_17] : memref<1x512xf32, #tpu.memory_space<vmem>>, vector<1x512xf32>
      %c0_18 = arith.constant 0 : index
      %c0_19 = arith.constant 0 : index
      %23 = vector.load %arg16[%c0_18, %c0_19] : memref<1x1xf32, #tpu.memory_space<vmem>>, vector<1x1xf32>
      %24 = vector.broadcast %23 : vector<1x1xf32> to vector<1x512xf32>
      %25 = arith.divf %22, %24 : vector<1x512xf32>
      %26 = arith.truncf %25 : vector<1x512xf32> to vector<1x512xbf16>
      %c0_20 = arith.constant 0 : index
      %c0_21 = arith.constant 0 : index
      %27 = vector.load %arg11[%c0_20, %c0_21] : memref<512x128xbf16, #tpu.memory_space<vmem>>, vector<512x128xbf16>
      %cst_22 = arith.constant dense<0.000000e+00> : vector<1x128xf32>
      %28 = tpu.matmul %26, %27, %cst_22 {dimension_numbers = #tpu.dot_dimension_numbers<[1], [0], [0], [1], [0, 0, 1, 1], [], []>} : vector<1x512xbf16>, vector<512x128xbf16>, vector<1x128xf32> -> vector<1x128xf32>
      %c0_23 = arith.constant 0 : index
      %c0_24 = arith.constant 0 : index
      %29 = vector.load %arg12[%c0_23, %c0_24] : memref<1x128xf32, #tpu.memory_space<vmem>>, vector<1x128xf32>
      %30 = arith.addf %28, %29 : vector<1x128xf32>
      %c0_25 = arith.constant 0 : index
      %c0_26 = arith.constant 0 : index
      %31 = vector.load %arg13[%c0_25, %c0_26] : memref<1x128xf32, #tpu.memory_space<vmem>>, vector<1x128xf32>
      tpu.vector_store %arg13[%c0_25, %c0_26], %30 {strides = array<i32>} : memref<1x128xf32, #tpu.memory_space<vmem>>, vector<1x128xf32>,
    } else {
    }
    return
  }
  func.func @transform_0(%arg0: i32, %arg1: i32) -> (i32, i32) {
    %c0_i32 = arith.constant 0 : i32
    return %arg0, %arg1 : i32, i32
  }
  func.func @transform_1(%arg0: i32, %arg1: i32) -> (i32, i32) {
    %c0_i32 = arith.constant 0 : i32
    %c0_i32_0 = arith.constant 0 : i32
    return %arg1, %c0_i32 : i32, i32
  }
  func.func @transform_2(%arg0: i32, %arg1: i32) -> (i32, i32) {
    %c0_i32 = arith.constant 0 : i32
    %c0_i32_0 = arith.constant 0 : i32
    %c0_i32_1 = arith.constant 0 : i32
    return %c0_i32, %c0_i32_0 : i32, i32
  }
  func.func @transform_3(%arg0: i32, %arg1: i32) -> (i32, i32) {
    %c0_i32 = arith.constant 0 : i32
    %c0_i32_0 = arith.constant 0 : i32
    %c0_i32_1 = arith.constant 0 : i32
    return %c0_i32, %c0_i32_0 : i32, i32
  }
  func.func @transform_4(%arg0: i32, %arg1: i32) -> (i32, i32) {
    %c0_i32 = arith.constant 0 : i32
    %c0_i32_0 = arith.constant 0 : i32
    %c0_i32_1 = arith.constant 0 : i32
    return %c0_i32, %c0_i32_0 : i32, i32
  }
  func.func @transform_5(%arg0: i32, %arg1: i32) -> (i32, i32) {
    %c0_i32 = arith.constant 0 : i32
    %c0_i32_0 = arith.constant 0 : i32
    %c0_i32_1 = arith.constant 0 : i32
    return %c0_i32, %c0_i32_0 : i32, i32
  }
  func.func @transform_6(%arg0: i32, %arg1: i32) -> (i32, i32) {
    %c0_i32 = arith.constant 0 : i32
    %c0_i32_0 = arith.constant 0 : i32
    %c0_i32_1 = arith.constant 0 : i32
    return %c0_i32, %c0_i32_0 : i32, i32
  }
  func.func @transform_7(%arg0: i32, %arg1: i32) -> (i32, i32) {
    %c0_i32 = arith.constant 0 : i32
    %c0_i32_0 = arith.constant 0 : i32
    %c0_i32_1 = arith.constant 0 : i32
    return %c0_i32, %c0_i32_0 : i32, i32
  }
  func.func @transform_8(%arg0: i32, %arg1: i32) -> (i32, i32) {
    %c0_i32 = arith.constant 0 : i32
    %c0_i32_0 = arith.constant 0 : i32
    %c0_i32_1 = arith.constant 0 : i32
    return %c0_i32, %c0_i32_0 : i32, i32
  }
  func.func @transform_9(%arg0: i32, %arg1: i32) -> (i32, i32) {
    %c0_i32 = arith.constant 0 : i32
    %c0_i32_0 = arith.constant 0 : i32
    %c0_i32_1 = arith.constant 0 : i32
    return %c0_i32, %c0_i32_0 : i32, i32
  }
  func.func @transform_10(%arg0: i32, %arg1: i32) -> (i32, i32) {
    %c0_i32 = arith.constant 0 : i32
    %c0_i32_0 = arith.constant 0 : i32
    %c0_i32_1 = arith.constant 0 : i32
    return %c0_i32, %c0_i32_0 : i32, i32
  }
  func.func @transform_11(%arg0: i32, %arg1: i32) -> (i32, i32) {
    %c0_i32 = arith.constant 0 : i32
    %c0_i32_0 = arith.constant 0 : i32
    %c0_i32_1 = arith.constant 0 : i32
    return %c0_i32, %c0_i32_0 : i32, i32
  }
}

</mosaic_0001>

<llo_original>
// kernel: mil_gated_attention_forward.1
$region0: #{mil_gated_attention_forward.1}
  #allocation0 [shape = 'u32[]', space=smem, size = 0x4, offset = 0x4, fixed_abs, tag = 'smem constant byte address 0x4 - core index']
  #allocation1 [shape = 'u32[144,128]{1,0:T(1,128)}', space=vmem, size = 0x12000, scoped, tag = 'internal scratch']
  #allocation2 [shape = 'f32[16,512]{1,0:T(8,128)}', space=vmem, size = 0x8000, scoped, tag = 'scratch operand']
  #allocation3 [shape = 'f32[1,1]{1,0:T(1,128)}', space=vmem, size = 0x200, scoped, tag = 'scratch operand']
  #allocation4 [shape = 'f32[1,1]{1,0:T(1,128)}', space=vmem, size = 0x200, scoped, tag = 'scratch operand']
  #allocation5 [shape = 'f32[1,512]{1,0:T(1,128)}', space=vmem, size = 0x800, scoped, tag = 'scratch operand']
  #allocation6 [shape = 'f32[1,1]{1,0:T(1,128)S(1)}', space=vmem, size = 0x200, scoped, tag = 'scoped memory for mil_gated_attention_forward.1']
  %s0 = inlined_call_operand.vmem [shape: bf16[16,768], index: 0, kind: input, shape index: {}]
  %s1 = inlined_call_operand.vmem [shape: bf16[768,512], index: 1, kind: input, shape index: {}]
  %s2 = inlined_call_operand.vmem [shape: f32[1,512], index: 2, kind: input, shape index: {}]
  %s3 = inlined_call_operand.vmem [shape: bf16[512,128], index: 3, kind: input, shape index: {}]
  %s4 = inlined_call_operand.vmem [shape: f32[1,128], index: 4, kind: input, shape index: {}]
  %s5 = inlined_call_operand.vmem [shape: bf16[512,128], index: 5, kind: input, shape index: {}]
  %s6 = inlined_call_operand.vmem [shape: f32[1,128], index: 6, kind: input, shape index: {}]
  %s7 = inlined_call_operand.vmem [shape: f32[1,128], index: 7, kind: input, shape index: {}]
  %s8 = inlined_call_operand.<no memory space> [shape: f32[1,1], index: 8, kind: input, shape index: {}]
  %s9 = inlined_call_operand.vmem [shape: bf16[512,128], index: 9, kind: input, shape index: {}]
  %s10 = inlined_call_operand.vmem [shape: f32[1,128], index: 10, kind: input, shape index: {}]
  %s11 = inlined_call_operand.hbm [shape: f32[1,128], index: 11, kind: output, shape index: {}]
  %s12 = sld [smem:[#allocation0]]
  $region70: #{mil_gated_attention_forward.1} parent=0
    _
  %s14 = ssub.s32 1, %s12
  %s15 = scalar_select 0, %s14, %s12
  %v16 = vstv %s8
  %17 = vst [vmem:[#allocation6] sm:$0x1] %v16
  $region1: #{mil_gated_attention_forward.1} parent=0
    #allocation7 [shape = 'u8[512]{0}', space=vmem, size = 0x400, scoped, tag = 'output window, operand 0, single buffered']
    #allocation8 [shape = 's32[1]{0}', space=sflag, size = 0x4, scoped, tag = 'scoped memory for mil_gated_attention_forward.1']
    %18 = vsyncpa [#allocation8], 0
    // Predicated region
    $region2: #{mil_gated_attention_forward.1} parent=1 // pred_check
      _
    $region3: #{mil_gated_attention_forward.1} parent=1 // pred_check_branch
      %20 = sbr.rel (0) target = $region5
    $region4: #{mil_gated_attention_forward.1} parent=1 // pred_region
      _
    $region5: #{mil_gated_attention_forward.1} parent=1 // pred_fallthru
      _
    // Predicated region
    $region6: #{mil_gated_attention_forward.1} parent=1 // pred_check
      _
    $region7: #{mil_gated_attention_forward.1} parent=1 // pred_check_branch
      %22 = sbr.rel (0) target = $region9
    $region8: #{mil_gated_attention_forward.1} parent=1 // pred_region
      _
    $region9: #{mil_gated_attention_forward.1} parent=1 // pred_fallthru
      _
    // Predicated region
    $region10: #{mil_gated_attention_forward.1} parent=1 // pred_check
      _
    $region11: #{mil_gated_attention_forward.1} parent=1 // pred_check_branch
      %24 = sbr.rel (0) target = $region13
    $region12: #{mil_gated_attention_forward.1} parent=1 // pred_region
      _
    $region13: #{mil_gated_attention_forward.1} parent=1 // pred_fallthru
      _
    // Predicated region
    $region14: #{mil_gated_attention_forward.1} parent=1 // pred_check
      _
    $region15: #{mil_gated_attention_forward.1} parent=1 // pred_check_branch
      %26 = sbr.rel (0) target = $region17
    $region16: #{mil_gated_attention_forward.1} parent=1 // pred_region
      _
    $region17: #{mil_gated_attention_forward.1} parent=1 // pred_fallthru
      _
    // Predicated region
    $region18: #{mil_gated_attention_forward.1} parent=1 // pred_check
      _
    $region19: #{mil_gated_attention_forward.1} parent=1 // pred_check_branch
      %28 = sbr.rel (0) target = $region21
    $region20: #{mil_gated_attention_forward.1} parent=1 // pred_region
      _
    $region21: #{mil_gated_attention_forward.1} parent=1 // pred_fallthru
      _
    // Predicated region
    $region22: #{mil_gated_attention_forward.1} parent=1 // pred_check
      _
    $region23: #{mil_gated_attention_forward.1} parent=1 // pred_check_branch
      %30 = sbr.rel (0) target = $region25
    $region24: #{mil_gated_attention_forward.1} parent=1 // pred_region
      _
    $region25: #{mil_gated_attention_forward.1} parent=1 // pred_fallthru
      _
    // Predicated region
    $region26: #{mil_gated_attention_forward.1} parent=1 // pred_check
      _
    $region27: #{mil_gated_attention_forward.1} parent=1 // pred_check_branch
      %32 = sbr.rel (0) target = $region29
    $region28: #{mil_gated_attention_forward.1} parent=1 // pred_region
      _
    $region29: #{mil_gated_attention_forward.1} parent=1 // pred_fallthru
      _
    // Predicated region
    $region30: #{mil_gated_attention_forward.1} parent=1 // pred_check
      _
    $region31: #{mil_gated_attention_forward.1} parent=1 // pred_check_branch
      %34 = sbr.rel (0) target = $region33
    $region32: #{mil_gated_attention_forward.1} parent=1 // pred_region
      _
    $region33: #{mil_gated_attention_forward.1} parent=1 // pred_fallthru
      _
    // Predicated region
    $region34: #{mil_gated_attention_forward.1} parent=1 // pred_check
      _
    $region35: #{mil_gated_attention_forward.1} parent=1 // pred_check_branch
      %36 = sbr.rel (0) target = $region37
    $region36: #{mil_gated_attention_forward.1} parent=1 // pred_region
      _
    $region37: #{mil_gated_attention_forward.1} parent=1 // pred_fallthru
      _
    // Predicated region
    $region38: #{mil_gated_attention_forward.1} parent=1 // pred_check
      _
    $region39: #{mil_gated_attention_forward.1} parent=1 // pred_check_branch
      %38 = sbr.rel (0) target = $region41
    $region40: #{mil_gated_attention_forward.1} parent=1 // pred_region
      _
    $region41: #{mil_gated_attention_forward.1} parent=1 // pred_fallthru
      _
    // Predicated region
    $region42: #{mil_gated_attention_forward.1} parent=1 // pred_check
      _
    $region43: #{mil_gated_attention_forward.1} parent=1 // pred_check_branch
      %40 = sbr.rel (0) target = $region45
    $region44: #{mil_gated_attention_forward.1} parent=1 // pred_region
      _
    $region45: #{mil_gated_attention_forward.1} parent=1 // pred_fallthru
      _
    %p42 = scmp.eq.s32.totalorder 0, 0
    %p43 = scmp.eq.s32.totalorder 0, 0
    %p44 = pnand %p42, %p43
    %p45 = pneg %p44
    // Predicated region
    $region46: #{mil_gated_attention_forward.1} parent=1 // pred_check
      _
    $region47: #{mil_gated_attention_forward.1} parent=1 // pred_check_branch
      %47 = sbr.rel (%p44) target = $region49
    $region48: #{mil_gated_attention_forward.1} parent=1 // pred_region
      %vm48 = vcmask 0
      %49 = vst.msk [vmem:[#allocation3] sm:$0x1] %vm48, -inf
      %50 = vst.msk [vmem:[#allocation4] sm:$0x1] %vm48, 0.0
      %v51 = vlaneseq
      %vm52 = vcmp.ge.s32.totalorder %v51, 0
      %vm53 = vcmp.lt.s32.totalorder %v51, 512
      %vm54 = vmand %vm52, %vm53
      %55 = vst.msk [vmem:[#allocation5] sm:$0xf] %vm54, 0.0
    $region49: #{mil_gated_attention_forward.1} parent=1 // pred_fallthru
      _
    // Predicated region
    $region50: #{mil_gated_attention_forward.1} parent=1 // pred_check
      %p56 = pneg %p43
    $region51: #{mil_gated_attention_forward.1} parent=1 // pred_check_branch
      %58 = sbr.rel (%p56) target = $region53
    $region52: #{mil_gated_attention_forward.1} parent=1 // pred_region
      %59 = vst [vmem:[#allocation2] sm:$0xff] 0.0
      %60 = vst [vmem:[#allocation2 + $0x8] sm:$0xff] 0.0
      %61 = vst [vmem:[#allocation2 + $0x10] sm:$0xff] 0.0
      %62 = vst [vmem:[#allocation2 + $0x18] sm:$0xff] 0.0
      %63 = vst [vmem:[#allocation2 + $0x20] sm:$0xff] 0.0
      %64 = vst [vmem:[#allocation2 + $0x28] sm:$0xff] 0.0
      %65 = vst [vmem:[#allocation2 + $0x30] sm:$0xff] 0.0
      %66 = vst [vmem:[#allocation2 + $0x38] sm:$0xff] 0.0
    $region53: #{mil_gated_attention_forward.1} parent=1 // pred_fallthru
      _
    %v67 = vld [vmem:[#allocation2] sm:$0xff]
    %v68 = vld [vmem:[#allocation2 + $0x8] sm:$0xff]
    %v69 = vld [vmem:[#allocation2 + $0x10] sm:$0xff]
    %v70 = vld [vmem:[#allocation2 + $0x18] sm:$0xff]
    %v71 = vld [vmem:[#allocation2 + $0x20] sm:$0xff]
    %v72 = vld [vmem:[#allocation2 + $0x28] sm:$0xff]
    %v73 = vld [vmem:[#allocation2 + $0x30] sm:$0xff]
    %v74 = vld [vmem:[#allocation2 + $0x38] sm:$0xff]
    %v75 = vld [vmem:[%s0] sm:$0xff]
    %v76 = vld [vmem:[%s0 + $0x8] sm:$0xff]
    %v77 = vld [vmem:[%s0 + $0x10] sm:$0xff]
    %v78 = vld [vmem:[%s0 + $0x18] sm:$0xff]
    %v79 = vld [vmem:[%s0 + $0x20] sm:$0xff]
    %v80 = vld [vmem:[%s0 + $0x28] sm:$0xff]
    %v81 = vld [vmem:[%s1] sm:$0xff]
    %v82 = vld [vmem:[%s1 + $0x8] sm:$0xff]
    %v83 = vld [vmem:[%s1 + $0x10] sm:$0xff]
    %v84 = vld [vmem:[%s1 + $0x18] sm:$0xff]
    %v85 = vld [vmem:[%s1 + $0x20] sm:$0xff]
    %v86 = vld [vmem:[%s1 + $0x28] sm:$0xff]
    %v87 = vld [vmem:[%s1 + $0x30] sm:$0xff]
    %v88 = vld [vmem:[%s1 + $0x38] sm:$0xff]
    %v89 = vld [vmem:[%s1 + $0x40] sm:$0xff]
    %v90 = vld [vmem:[%s1 + $0x48] sm:$0xff]
    %v91 = vld [vmem:[%s1 + $0x50] sm:$0xff]
    %v92 = vld [vmem:[%s1 + $0x58] sm:$0xff]
    %v93 = vld [vmem:[%s1 + $0x60] sm:$0xff]
    %v94 = vld [vmem:[%s1 + $0x68] sm:$0xff]
    %v95 = vld [vmem:[%s1 + $0x70] sm:$0xff]
    %v96 = vld [vmem:[%s1 + $0x78] sm:$0xff]
    %v97 = vld [vmem:[%s1 + $0x80] sm:$0xff]
    %v98 = vld [vmem:[%s1 + $0x88] sm:$0xff]
    %v99 = vld [vmem:[%s1 + $0x90] sm:$0xff]
    %v100 = vld [vmem:[%s1 + $0x98] sm:$0xff]
    %v101 = vld [vmem:[%s1 + $0xa0] sm:$0xff]
    %v102 = vld [vmem:[%s1 + $0xa8] sm:$0xff]
    %v103 = vld [vmem:[%s1 + $0xb0] sm:$0xff]
    %v104 = vld [vmem:[%s1 + $0xb8] sm:$0xff]
    %v105 = vld [vmem:[%s1 + $0xc0] sm:$0xff]
    %v106 = vld [vmem:[%s1 + $0xc8] sm:$0xff]
    %v107 = vld [vmem:[%s1 + $0xd0] sm:$0xff]
    %v108 = vld [vmem:[%s1 + $0xd8] sm:$0xff]
    %v109 = vld [vmem:[%s1 + $0xe0] sm:$0xff]
    %v110 = vld [vmem:[%s1 + $0xe8] sm:$0xff]
    %v111 = vld [vmem:[%s1 + $0xf0] sm:$0xff]
    %v112 = vld [vmem:[%s1 + $0xf8] sm:$0xff]
    %v113 = vld [vmem:[%s1 + $0x100] sm:$0xff]
    %v114 = vld [vmem:[%s1 + $0x108] sm:$0xff]
    %v115 = vld [vmem:[%s1 + $0x110] sm:$0xff]
    %v116 = vld [vmem:[%s1 + $0x118] sm:$0xff]
    %v117 = vld [vmem:[%s1 + $0x120] sm:$0xff]
    %v118 = vld [vmem:[%s1 + $0x128] sm:$0xff]
    %v119 = vld [vmem:[%s1 + $0x130] sm:$0xff]
    %v120 = vld [vmem:[%s1 + $0x138] sm:$0xff]
    %v121 = vld [vmem:[%s1 + $0x140] sm:$0xff]
    %v122 = vld [vmem:[%s1 + $0x148] sm:$0xff]
    %v123 = vld [vmem:[%s1 + $0x150] sm:$0xff]
    %v124 = vld [vmem:[%s1 + $0x158] sm:$0xff]
    %v125 = vld [vmem:[%s1 + $0x160] sm:$0xff]
    %v126 = vld [vmem:[%s1 + $0x168] sm:$0xff]
    %v127 = vld [vmem:[%s1 + $0x170] sm:$0xff]
    %v128 = vld [vmem:[%s1 + $0x178] sm:$0xff]
    %v129 = vld [vmem:[%s1 + $0x180] sm:$0xff]
    %v130 = vld [vmem:[%s1 + $0x188] sm:$0xff]
    %v131 = vld [vmem:[%s1 + $0x190] sm:$0xff]
    %v132 = vld [vmem:[%s1 + $0x198] sm:$0xff]
    %v133 = vld [vmem:[%s1 + $0x1a0] sm:$0xff]
    %v134 = vld [vmem:[%s1 + $0x1a8] sm:$0xff]
    %v135 = vld [vmem:[%s1 + $0x1b0] sm:$0xff]
    %v136 = vld [vmem:[%s1 + $0x1b8] sm:$0xff]
    %v137 = vld [vmem:[%s1 + $0x1c0] sm:$0xff]
    %v138 = vld [vmem:[%s1 + $0x1c8] sm:$0xff]
    %v139 = vld [vmem:[%s1 + $0x1d0] sm:$0xff]
    %v140 = vld [vmem:[%s1 + $0x1d8] sm:$0xff]
    %v141 = vld [vmem:[%s1 + $0x1e0] sm:$0xff]
    %v142 = vld [vmem:[%s1 + $0x1e8] sm:$0xff]
    %v143 = vld [vmem:[%s1 + $0x1f0] sm:$0xff]
    %v144 = vld [vmem:[%s1 + $0x1f8] sm:$0xff]
    %v145 = vld [vmem:[%s1 + $0x200] sm:$0xff]
    %v146 = vld [vmem:[%s1 + $0x208] sm:$0xff]
    %v147 = vld [vmem:[%s1 + $0x210] sm:$0xff]
    %v148 = vld [vmem:[%s1 + $0x218] sm:$0xff]
    %v149 = vld [vmem:[%s1 + $0x220] sm:$0xff]
    %v150 = vld [vmem:[%s1 + $0x228] sm:$0xff]
    %v151 = vld [vmem:[%s1 + $0x230] sm:$0xff]
    %v152 = vld [vmem:[%s1 + $0x238] sm:$0xff]
    %v153 = vld [vmem:[%s1 + $0x240] sm:$0xff]
    %v154 = vld [vmem:[%s1 + $0x248] sm:$0xff]
    %v155 = vld [vmem:[%s1 + $0x250] sm:$0xff]
    %v156 = vld [vmem:[%s1 + $0x258] sm:$0xff]
    %v157 = vld [vmem:[%s1 + $0x260] sm:$0xff]
    %v158 = vld [vmem:[%s1 + $0x268] sm:$0xff]
    %v159 = vld [vmem:[%s1 + $0x270] sm:$0xff]
    %v160 = vld [vmem:[%s1 + $0x278] sm:$0xff]
    %v161 = vld [vmem:[%s1 + $0x280] sm:$0xff]
    %v162 = vld [vmem:[%s1 + $0x288] sm:$0xff]
    %v163 = vld [vmem:[%s1 + $0x290] sm:$0xff]
    %v164 = vld [vmem:[%s1 + $0x298] sm:$0xff]
    %v165 = vld [vmem:[%s1 + $0x2a0] sm:$0xff]
    %v166 = vld [vmem:[%s1 + $0x2a8] sm:$0xff]
    %v167 = vld [vmem:[%s1 + $0x2b0] sm:$0xff]
    %v168 = vld [vmem:[%s1 + $0x2b8] sm:$0xff]
    %v169 = vld [vmem:[%s1 + $0x2c0] sm:$0xff]
    %v170 = vld [vmem:[%s1 + $0x2c8] sm:$0xff]
    %v171 = vld [vmem:[%s1 + $0x2d0] sm:$0xff]
    %v172 = vld [vmem:[%s1 + $0x2d8] sm:$0xff]
    %v173 = vld [vmem:[%s1 + $0x2e0] sm:$0xff]
    %v174 = vld [vmem:[%s1 + $0x2e8] sm:$0xff]
    %v175 = vld [vmem:[%s1 + $0x2f0] sm:$0xff]
    %v176 = vld [vmem:[%s1 + $0x2f8] sm:$0xff]
    %v177 = vld [vmem:[%s1 + $0x300] sm:$0xff]
    %v178 = vld [vmem:[%s1 + $0x308] sm:$0xff]
    %v179 = vld [vmem:[%s1 + $0x310] sm:$0xff]
    %v180 = vld [vmem:[%s1 + $0x318] sm:$0xff]
    %v181 = vld [vmem:[%s1 + $0x320] sm:$0xff]
    %v182 = vld [vmem:[%s1 + $0x328] sm:$0xff]
    %v183 = vld [vmem:[%s1 + $0x330] sm:$0xff]
    %v184 = vld [vmem:[%s1 + $0x338] sm:$0xff]
    %v185 = vld [vmem:[%s1 + $0x340] sm:$0xff]
    %v186 = vld [vmem:[%s1 + $0x348] sm:$0xff]
    %v187 = vld [vmem:[%s1 + $0x350] sm:$0xff]
    %v188 = vld [vmem:[%s1 + $0x358] sm:$0xff]
    %v189 = vld [vmem:[%s1 + $0x360] sm:$0xff]
    %v190 = vld [vmem:[%s1 + $0x368] sm:$0xff]
    %v191 = vld [vmem:[%s1 + $0x370] sm:$0xff]
    %v192 = vld [vmem:[%s1 + $0x378] sm:$0xff]
    %v193 = vld [vmem:[%s1 + $0x380] sm:$0xff]
    %v194 = vld [vmem:[%s1 + $0x388] sm:$0xff]
    %v195 = vld [vmem:[%s1 + $0x390] sm:$0xff]
    %v196 = vld [vmem:[%s1 + $0x398] sm:$0xff]
    %v197 = vld [vmem:[%s1 + $0x3a0] sm:$0xff]
    %v198 = vld [vmem:[%s1 + $0x3a8] sm:$0xff]
    %v199 = vld [vmem:[%s1 + $0x3b0] sm:$0xff]
    %v200 = vld [vmem:[%s1 + $0x3b8] sm:$0xff]
    %v201 = vld [vmem:[%s1 + $0x3c0] sm:$0xff]
    %v202 = vld [vmem:[%s1 + $0x3c8] sm:$0xff]
    %v203 = vld [vmem:[%s1 + $0x3d0] sm:$0xff]
    %v204 = vld [vmem:[%s1 + $0x3d8] sm:$0xff]
    %v205 = vld [vmem:[%s1 + $0x3e0] sm:$0xff]
    %v206 = vld [vmem:[%s1 + $0x3e8] sm:$0xff]
    %v207 = vld [vmem:[%s1 + $0x3f0] sm:$0xff]
    %v208 = vld [vmem:[%s1 + $0x3f8] sm:$0xff]
    %v209 = vld [vmem:[%s1 + $0x400] sm:$0xff]
    %v210 = vld [vmem:[%s1 + $0x408] sm:$0xff]
    %v211 = vld [vmem:[%s1 + $0x410] sm:$0xff]
    %v212 = vld [vmem:[%s1 + $0x418] sm:$0xff]
    %v213 = vld [vmem:[%s1 + $0x420] sm:$0xff]
    %v214 = vld [vmem:[%s1 + $0x428] sm:$0xff]
    %v215 = vld [vmem:[%s1 + $0x430] sm:$0xff]
    %v216 = vld [vmem:[%s1 + $0x438] sm:$0xff]
    %v217 = vld [vmem:[%s1 + $0x440] sm:$0xff]
    %v218 = vld [vmem:[%s1 + $0x448] sm:$0xff]
    %v219 = vld [vmem:[%s1 + $0x450] sm:$0xff]
    %v220 = vld [vmem:[%s1 + $0x458] sm:$0xff]
    %v221 = vld [vmem:[%s1 + $0x460] sm:$0xff]
    %v222 = vld [vmem:[%s1 + $0x468] sm:$0xff]
    %v223 = vld [vmem:[%s1 + $0x470] sm:$0xff]
    %v224 = vld [vmem:[%s1 + $0x478] sm:$0xff]
    %v225 = vld [vmem:[%s1 + $0x480] sm:$0xff]
    %v226 = vld [vmem:[%s1 + $0x488] sm:$0xff]
    %v227 = vld [vmem:[%s1 + $0x490] sm:$0xff]
    %v228 = vld [vmem:[%s1 + $0x498] sm:$0xff]
    %v229 = vld [vmem:[%s1 + $0x4a0] sm:$0xff]
    %v230 = vld [vmem:[%s1 + $0x4a8] sm:$0xff]
    %v231 = vld [vmem:[%s1 + $0x4b0] sm:$0xff]
    %v232 = vld [vmem:[%s1 + $0x4b8] sm:$0xff]
    %v233 = vld [vmem:[%s1 + $0x4c0] sm:$0xff]
    %v234 = vld [vmem:[%s1 + $0x4c8] sm:$0xff]
    %v235 = vld [vmem:[%s1 + $0x4d0] sm:$0xff]
    %v236 = vld [vmem:[%s1 + $0x4d8] sm:$0xff]
    %v237 = vld [vmem:[%s1 + $0x4e0] sm:$0xff]
    %v238 = vld [vmem:[%s1 + $0x4e8] sm:$0xff]
    %v239 = vld [vmem:[%s1 + $0x4f0] sm:$0xff]
    %v240 = vld [vmem:[%s1 + $0x4f8] sm:$0xff]
    %v241 = vld [vmem:[%s1 + $0x500] sm:$0xff]
    %v242 = vld [vmem:[%s1 + $0x508] sm:$0xff]
    %v243 = vld [vmem:[%s1 + $0x510] sm:$0xff]
    %v244 = vld [vmem:[%s1 + $0x518] sm:$0xff]
    %v245 = vld [vmem:[%s1 + $0x520] sm:$0xff]
    %v246 = vld [vmem:[%s1 + $0x528] sm:$0xff]
    %v247 = vld [vmem:[%s1 + $0x530] sm:$0xff]
    %v248 = vld [vmem:[%s1 + $0x538] sm:$0xff]
    %v249 = vld [vmem:[%s1 + $0x540] sm:$0xff]
    %v250 = vld [vmem:[%s1 + $0x548] sm:$0xff]
    %v251 = vld [vmem:[%s1 + $0x550] sm:$0xff]
    %v252 = vld [vmem:[%s1 + $0x558] sm:$0xff]
    %v253 = vld [vmem:[%s1 + $0x560] sm:$0xff]
    %v254 = vld [vmem:[%s1 + $0x568] sm:$0xff]
    %v255 = vld [vmem:[%s1 + $0x570] sm:$0xff]
    %v256 = vld [vmem:[%s1 + $0x578] sm:$0xff]
    %v257 = vld [vmem:[%s1 + $0x580] sm:$0xff]
    %v258 = vld [vmem:[%s1 + $0x588] sm:$0xff]
    %v259 = vld [vmem:[%s1 + $0x590] sm:$0xff]
    %v260 = vld [vmem:[%s1 + $0x598] sm:$0xff]
    %v261 = vld [vmem:[%s1 + $0x5a0] sm:$0xff]
    %v262 = vld [vmem:[%s1 + $0x5a8] sm:$0xff]
    %v263 = vld [vmem:[%s1 + $0x5b0] sm:$0xff]
    %v264 = vld [vmem:[%s1 + $0x5b8] sm:$0xff]
    %v265 = vld [vmem:[%s1 + $0x5c0] sm:$0xff]
    %v266 = vld [vmem:[%s1 + $0x5c8] sm:$0xff]
    %v267 = vld [vmem:[%s1 + $0x5d0] sm:$0xff]
    %v268 = vld [vmem:[%s1 + $0x5d8] sm:$0xff]
    %v269 = vld [vmem:[%s1 + $0x5e0] sm:$0xff]
    %v270 = vld [vmem:[%s1 + $0x5e8] sm:$0xff]
    %v271 = vld [vmem:[%s1 + $0x5f0] sm:$0xff]
    %v272 = vld [vmem:[%s1 + $0x5f8] sm:$0xff]
    %v279 = vunpack.c.l.b16 %v75
    %v280 = vunpack.c.h.b16 %v75
    %v281 = vunpack.c.l.b16 %v76
    %v282 = vunpack.c.h.b16 %v76
    %v283 = vunpack.c.l.b16 %v77
    %v284 = vunpack.c.h.b16 %v77
    %v285 = vunpack.c.l.b16 %v78
    %v286 = vunpack.c.h.b16 %v78
    %v287 = vunpack.c.l.b16 %v79
    %v288 = vunpack.c.h.b16 %v79
    %v289 = vunpack.c.l.b16 %v80
    %v290 = vunpack.c.h.b16 %v80
    %v291 = vpack.c.b16 %v285, %v279
    %v292 = vpack.c.b16 %v286, %v280
    %v293 = vpack.c.b16 %v287, %v281
    %v294 = vpack.c.b16 %v288, %v282
    %v295 = vpack.c.b16 %v289, %v283
    %v296 = vpack.c.b16 %v290, %v284
    %v495 = vunpack.c.l.b16 %v81
    %v496 = vunpack.c.h.b16 %v81
    %v497 = vunpack.c.l.b16 %v82
    %v498 = vunpack.c.h.b16 %v82
    %v499 = vunpack.c.l.b16 %v83
    %v500 = vunpack.c.h.b16 %v83
    %v501 = vunpack.c.l.b16 %v84
    %v502 = vunpack.c.h.b16 %v84
    %v503 = vunpack.c.l.b16 %v85
    %v504 = vunpack.c.h.b16 %v85
    %v505 = vunpack.c.l.b16 %v86
    %v506 = vunpack.c.h.b16 %v86
    %v507 = vunpack.c.l.b16 %v87
    %v508 = vunpack.c.h.b16 %v87
    %v509 = vunpack.c.l.b16 %v88
    %v510 = vunpack.c.h.b16 %v88
    %v511 = vunpack.c.l.b16 %v89
    %v512 = vunpack.c.h.b16 %v89
    %v513 = vunpack.c.l.b16 %v90
    %v514 = vunpack.c.h.b16 %v90
    %v515 = vunpack.c.l.b16 %v91
    %v516 = vunpack.c.h.b16 %v91
    %v517 = vunpack.c.l.b16 %v92
    %v518 = vunpack.c.h.b16 %v92
    %v519 = vunpack.c.l.b16 %v93
    %v520 = vunpack.c.h.b16 %v93
    %v521 = vunpack.c.l.b16 %v94
    %v522 = vunpack.c.h.b16 %v94
    %v523 = vunpack.c.l.b16 %v95
    %v524 = vunpack.c.h.b16 %v95
    %v525 = vunpack.c.l.b16 %v96
    %v526 = vunpack.c.h.b16 %v96
    %v527 = vunpack.c.l.b16 %v97
    %v528 = vunpack.c.h.b16 %v97
    %v529 = vunpack.c.l.b16 %v98
    %v530 = vunpack.c.h.b16 %v98
    %v531 = vunpack.c.l.b16 %v99
    %v532 = vunpack.c.h.b16 %v99
    %v533 = vunpack.c.l.b16 %v100
    %v534 = vunpack.c.h.b16 %v100
    %v535 = vunpack.c.l.b16 %v101
    %v536 = vunpack.c.h.b16 %v101
    %v537 = vunpack.c.l.b16 %v102
    %v538 = vunpack.c.h.b16 %v102
    %v539 = vunpack.c.l.b16 %v103
    %v540 = vunpack.c.h.b16 %v103
    %v541 = vunpack.c.l.b16 %v104
    %v542 = vunpack.c.h.b16 %v104
    %v543 = vunpack.c.l.b16 %v105
    %v544 = vunpack.c.h.b16 %v105
    %v545 = vunpack.c.l.b16 %v106
    %v546 = vunpack.c.h.b16 %v106
    %v547 = vunpack.c.l.b16 %v107
    %v548 = vunpack.c.h.b16 %v107
    %v549 = vunpack.c.l.b16 %v108
    %v550 = vunpack.c.h.b16 %v108
    %v551 = vunpack.c.l.b16 %v109
    %v552 = vunpack.c.h.b16 %v109
    %v553 = vunpack.c.l.b16 %v110
    %v554 = vunpack.c.h.b16 %v110
    %v555 = vunpack.c.l.b16 %v111
    %v556 = vunpack.c.h.b16 %v111
    %v557 = vunpack.c.l.b16 %v112
    %v558 = vunpack.c.h.b16 %v112
    %v559 = vunpack.c.l.b16 %v113
    %v560 = vunpack.c.h.b16 %v113
    %v561 = vunpack.c.l.b16 %v114
    %v562 = vunpack.c.h.b16 %v114
    %v563 = vunpack.c.l.b16 %v115
    %v564 = vunpack.c.h.b16 %v115
    %v565 = vunpack.c.l.b16 %v116
    %v566 = vunpack.c.h.b16 %v116
    %v567 = vunpack.c.l.b16 %v117
    %v568 = vunpack.c.h.b16 %v117
    %v569 = vunpack.c.l.b16 %v118
    %v570 = vunpack.c.h.b16 %v118
    %v571 = vunpack.c.l.b16 %v119
    %v572 = vunpack.c.h.b16 %v119
    %v573 = vunpack.c.l.b16 %v120
    %v574 = vunpack.c.h.b16 %v120
    %v575 = vunpack.c.l.b16 %v121
    %v576 = vunpack.c.h.b16 %v121
    %v577 = vunpack.c.l.b16 %v122
    %v578 = vunpack.c.h.b16 %v122
    %v579 = vunpack.c.l.b16 %v123
    %v580 = vunpack.c.h.b16 %v123
    %v581 = vunpack.c.l.b16 %v124
    %v582 = vunpack.c.h.b16 %v124
    %v583 = vunpack.c.l.b16 %v125
    %v584 = vunpack.c.h.b16 %v125
    %v585 = vunpack.c.l.b16 %v126
    %v586 = vunpack.c.h.b16 %v126
    %v587 = vunpack.c.l.b16 %v127
    %v588 = vunpack.c.h.b16 %v127
    %v589 = vunpack.c.l.b16 %v128
    %v590 = vunpack.c.h.b16 %v128
    %v591 = vunpack.c.l.b16 %v129
    %v592 = vunpack.c.h.b16 %v129
    %v593 = vunpack.c.l.b16 %v130
    %v594 = vunpack.c.h.b16 %v130
    %v595 = vunpack.c.l.b16 %v131
    %v596 = vunpack.c.h.b16 %v131
    %v597 = vunpack.c.l.b16 %v132
    %v598 = vunpack.c.h.b16 %v132
    %v599 = vunpack.c.l.b16 %v133
    %v600 = vunpack.c.h.b16 %v133
    %v601 = vunpack.c.l.b16 %v134
    %v602 = vunpack.c.h.b16 %v134
    %v603 = vunpack.c.l.b16 %v135
    %v604 = vunpack.c.h.b16 %v135
    %v605 = vunpack.c.l.b16 %v136
    %v606 = vunpack.c.h.b16 %v136
    %v607 = vunpack.c.l.b16 %v137
    %v608 = vunpack.c.h.b16 %v137
    %v609 = vunpack.c.l.b16 %v138
    %v610 = vunpack.c.h.b16 %v138
    %v611 = vunpack.c.l.b16 %v139
    %v612 = vunpack.c.h.b16 %v139
    %v613 = vunpack.c.l.b16 %v140
    %v614 = vunpack.c.h.b16 %v140
    %v615 = vunpack.c.l.b16 %v141
    %v616 = vunpack.c.h.b16 %v141
    %v617 = vunpack.c.l.b16 %v142
    %v618 = vunpack.c.h.b16 %v142
    %v619 = vunpack.c.l.b16 %v143
    %v620 = vunpack.c.h.b16 %v143
    %v621 = vunpack.c.l.b16 %v144
    %v622 = vunpack.c.h.b16 %v144
    %v623 = vunpack.c.l.b16 %v145
    %v624 = vunpack.c.h.b16 %v145
    %v625 = vunpack.c.l.b16 %v146
    %v626 = vunpack.c.h.b16 %v146
    %v627 = vunpack.c.l.b16 %v147
    %v628 = vunpack.c.h.b16 %v147
    %v629 = vunpack.c.l.b16 %v148
    %v630 = vunpack.c.h.b16 %v148
    %v631 = vunpack.c.l.b16 %v149
    %v632 = vunpack.c.h.b16 %v149
    %v633 = vunpack.c.l.b16 %v150
    %v634 = vunpack.c.h.b16 %v150
    %v635 = vunpack.c.l.b16 %v151
    %v636 = vunpack.c.h.b16 %v151
    %v637 = vunpack.c.l.b16 %v152
    %v638 = vunpack.c.h.b16 %v152
    %v639 = vunpack.c.l.b16 %v153
    %v640 = vunpack.c.h.b16 %v153
    %v641 = vunpack.c.l.b16 %v154
    %v642 = vunpack.c.h.b16 %v154
    %v643 = vunpack.c.l.b16 %v155
    %v644 = vunpack.c.h.b16 %v155
    %v645 = vunpack.c.l.b16 %v156
    %v646 = vunpack.c.h.b16 %v156
    %v647 = vunpack.c.l.b16 %v157
    %v648 = vunpack.c.h.b16 %v157
    %v649 = vunpack.c.l.b16 %v158
    %v650 = vunpack.c.h.b16 %v158
    %v651 = vunpack.c.l.b16 %v159
    %v652 = vunpack.c.h.b16 %v159
    %v653 = vunpack.c.l.b16 %v160
    %v654 = vunpack.c.h.b16 %v160
    %v655 = vunpack.c.l.b16 %v161
    %v656 = vunpack.c.h.b16 %v161
    %v657 = vunpack.c.l.b16 %v162
    %v658 = vunpack.c.h.b16 %v162
    %v659 = vunpack.c.l.b16 %v163
    %v660 = vunpack.c.h.b16 %v163
    %v661 = vunpack.c.l.b16 %v164
    %v662 = vunpack.c.h.b16 %v164
    %v663 = vunpack.c.l.b16 %v165
    %v664 = vunpack.c.h.b16 %v165
    %v665 = vunpack.c.l.b16 %v166
    %v666 = vunpack.c.h.b16 %v166
    %v667 = vunpack.c.l.b16 %v167
    %v668 = vunpack.c.h.b16 %v167
    %v669 = vunpack.c.l.b16 %v168
    %v670 = vunpack.c.h.b16 %v168
    %v671 = vunpack.c.l.b16 %v169
    %v672 = vunpack.c.h.b16 %v169
    %v673 = vunpack.c.l.b16 %v170
    %v674 = vunpack.c.h.b16 %v170
    %v675 = vunpack.c.l.b16 %v171
    %v676 = vunpack.c.h.b16 %v171
    %v677 = vunpack.c.l.b16 %v172
    %v678 = vunpack.c.h.b16 %v172
    %v679 = vunpack.c.l.b16 %v173
    %v680 = vunpack.c.h.b16 %v173
    %v681 = vunpack.c.l.b16 %v174
    %v682 = vunpack.c.h.b16 %v174
    %v683 = vunpack.c.l.b16 %v175
    %v684 = vunpack.c.h.b16 %v175
    %v685 = vunpack.c.l.b16 %v176
    %v686 = vunpack.c.h.b16 %v176
    %v687 = vunpack.c.l.b16 %v177
    %v688 = vunpack.c.h.b16 %v177
    %v689 = vunpack.c.l.b16 %v178
    %v690 = vunpack.c.h.b16 %v178
    %v691 = vunpack.c.l.b16 %v179
    %v692 = vunpack.c.h.b16 %v179
    %v693 = vunpack.c.l.b16 %v180
    %v694 = vunpack.c.h.b16 %v180
    %v695 = vunpack.c.l.b16 %v181
    %v696 = vunpack.c.h.b16 %v181
    %v697 = vunpack.c.l.b16 %v182
    %v698 = vunpack.c.h.b16 %v182
    %v699 = vunpack.c.l.b16 %v183
    %v700 = vunpack.c.h.b16 %v183
    %v701 = vunpack.c.l.b16 %v184
    %v702 = vunpack.c.h.b16 %v184
    %v703 = vunpack.c.l.b16 %v185
    %v704 = vunpack.c.h.b16 %v185
    %v705 = vunpack.c.l.b16 %v186
    %v706 = vunpack.c.h.b16 %v186
    %v707 = vunpack.c.l.b16 %v187
    %v708 = vunpack.c.h.b16 %v187
    %v709 = vunpack.c.l.b16 %v188
    %v710 = vunpack.c.h.b16 %v188
    %v711 = vunpack.c.l.b16 %v189
    %v712 = vunpack.c.h.b16 %v189
    %v713 = vunpack.c.l.b16 %v190
    %v714 = vunpack.c.h.b16 %v190
    %v715 = vunpack.c.l.b16 %v191
    %v716 = vunpack.c.h.b16 %v191
    %v717 = vunpack.c.l.b16 %v192
    %v718 = vunpack.c.h.b16 %v192
    %v719 = vunpack.c.l.b16 %v193
    %v720 = vunpack.c.h.b16 %v193
    %v721 = vunpack.c.l.b16 %v194
    %v722 = vunpack.c.h.b16 %v194
    %v723 = vunpack.c.l.b16 %v195
    %v724 = vunpack.c.h.b16 %v195
    %v725 = vunpack.c.l.b16 %v196
    %v726 = vunpack.c.h.b16 %v196
    %v727 = vunpack.c.l.b16 %v197
    %v728 = vunpack.c.h.b16 %v197
    %v729 = vunpack.c.l.b16 %v198
    %v730 = vunpack.c.h.b16 %v198
    %v731 = vunpack.c.l.b16 %v199
    %v732 = vunpack.c.h.b16 %v199
    %v733 = vunpack.c.l.b16 %v200
    %v734 = vunpack.c.h.b16 %v200
    %v735 = vunpack.c.l.b16 %v201
    %v736 = vunpack.c.h.b16 %v201
    %v737 = vunpack.c.l.b16 %v202
    %v738 = vunpack.c.h.b16 %v202
    %v739 = vunpack.c.l.b16 %v203
    %v740 = vunpack.c.h.b16 %v203
    %v741 = vunpack.c.l.b16 %v204
    %v742 = vunpack.c.h.b16 %v204
    %v743 = vunpack.c.l.b16 %v205
    %v744 = vunpack.c.h.b16 %v205
    %v745 = vunpack.c.l.b16 %v206
    %v746 = vunpack.c.h.b16 %v206
    %v747 = vunpack.c.l.b16 %v207
    %v748 = vunpack.c.h.b16 %v207
    %v749 = vunpack.c.l.b16 %v208
    %v750 = vunpack.c.h.b16 %v208
    %v751 = vunpack.c.l.b16 %v209
    %v752 = vunpack.c.h.b16 %v209
    %v753 = vunpack.c.l.b16 %v210
    %v754 = vunpack.c.h.b16 %v210
    %v755 = vunpack.c.l.b16 %v211
    %v756 = vunpack.c.h.b16 %v211
    %v757 = vunpack.c.l.b16 %v212
    %v758 = vunpack.c.h.b16 %v212
    %v759 = vunpack.c.l.b16 %v213
    %v760 = vunpack.c.h.b16 %v213
    %v761 = vunpack.c.l.b16 %v214
    %v762 = vunpack.c.h.b16 %v214
    %v763 = vunpack.c.l.b16 %v215
    %v764 = vunpack.c.h.b16 %v215
    %v765 = vunpack.c.l.b16 %v216
    %v766 = vunpack.c.h.b16 %v216
    %v767 = vunpack.c.l.b16 %v217
    %v768 = vunpack.c.h.b16 %v217
    %v769 = vunpack.c.l.b16 %v218
    %v770 = vunpack.c.h.b16 %v218
    %v771 = vunpack.c.l.b16 %v219
    %v772 = vunpack.c.h.b16 %v219
    %v773 = vunpack.c.l.b16 %v220
    %v774 = vunpack.c.h.b16 %v220
    %v775 = vunpack.c.l.b16 %v221
    %v776 = vunpack.c.h.b16 %v221
    %v777 = vunpack.c.l.b16 %v222
    %v778 = vunpack.c.h.b16 %v222
    %v779 = vunpack.c.l.b16 %v223
    %v780 = vunpack.c.h.b16 %v223
    %v781 = vunpack.c.l.b16 %v224
    %v782 = vunpack.c.h.b16 %v224
    %v783 = vunpack.c.l.b16 %v225
    %v784 = vunpack.c.h.b16 %v225
    %v785 = vunpack.c.l.b16 %v226
    %v786 = vunpack.c.h.b16 %v226
    %v787 = vunpack.c.l.b16 %v227
    %v788 = vunpack.c.h.b16 %v227
    %v789 = vunpack.c.l.b16 %v228
    %v790 = vunpack.c.h.b16 %v228
    %v791 = vunpack.c.l.b16 %v229
    %v792 = vunpack.c.h.b16 %v229
    %v793 = vunpack.c.l.b16 %v230
    %v794 = vunpack.c.h.b16 %v230
    %v795 = vunpack.c.l.b16 %v231
    %v796 = vunpack.c.h.b16 %v231
    %v797 = vunpack.c.l.b16 %v232
    %v798 = vunpack.c.h.b16 %v232
    %v799 = vunpack.c.l.b16 %v233
    %v800 = vunpack.c.h.b16 %v233
    %v801 = vunpack.c.l.b16 %v234
    %v802 = vunpack.c.h.b16 %v234
    %v803 = vunpack.c.l.b16 %v235
    %v804 = vunpack.c.h.b16 %v235
    %v805 = vunpack.c.l.b16 %v236
    %v806 = vunpack.c.h.b16 %v236
    %v807 = vunpack.c.l.b16 %v237
    %v808 = vunpack.c.h.b16 %v237
    %v809 = vunpack.c.l.b16 %v238
    %v810 = vunpack.c.h.b16 %v238
    %v811 = vunpack.c.l.b16 %v239
    %v812 = vunpack.c.h.b16 %v239
    %v813 = vunpack.c.l.b16 %v240
    %v814 = vunpack.c.h.b16 %v240
    %v815 = vunpack.c.l.b16 %v241
    %v816 = vunpack.c.h.b16 %v241
    %v817 = vunpack.c.l.b16 %v242
    %v818 = vunpack.c.h.b16 %v242
    %v819 = vunpack.c.l.b16 %v243
    %v820 = vunpack.c.h.b16 %v243
    %v821 = vunpack.c.l.b16 %v244
    %v822 = vunpack.c.h.b16 %v244
    %v823 = vunpack.c.l.b16 %v245
    %v824 = vunpack.c.h.b16 %v245
    %v825 = vunpack.c.l.b16 %v246
    %v826 = vunpack.c.h.b16 %v246
    %v827 = vunpack.c.l.b16 %v247
    %v828 = vunpack.c.h.b16 %v247
    %v829 = vunpack.c.l.b16 %v248
    %v830 = vunpack.c.h.b16 %v248
    %v831 = vunpack.c.l.b16 %v249
    %v832 = vunpack.c.h.b16 %v249
    %v833 = vunpack.c.l.b16 %v250
    %v834 = vunpack.c.h.b16 %v250
    %v835 = vunpack.c.l.b16 %v251
    %v836 = vunpack.c.h.b16 %v251
    %v837 = vunpack.c.l.b16 %v252
    %v838 = vunpack.c.h.b16 %v252
    %v839 = vunpack.c.l.b16 %v253
    %v840 = vunpack.c.h.b16 %v253
    %v841 = vunpack.c.l.b16 %v254
    %v842 = vunpack.c.h.b16 %v254
    %v843 = vunpack.c.l.b16 %v255
    %v844 = vunpack.c.h.b16 %v255
    %v845 = vunpack.c.l.b16 %v256
    %v846 = vunpack.c.h.b16 %v256
    %v847 = vunpack.c.l.b16 %v257
    %v848 = vunpack.c.h.b16 %v257
    %v849 = vunpack.c.l.b16 %v258
    %v850 = vunpack.c.h.b16 %v258
    %v851 = vunpack.c.l.b16 %v259
    %v852 = vunpack.c.h.b16 %v259
    %v853 = vunpack.c.l.b16 %v260
    %v854 = vunpack.c.h.b16 %v260
    %v855 = vunpack.c.l.b16 %v261
    %v856 = vunpack.c.h.b16 %v261
    %v857 = vunpack.c.l.b16 %v262
    %v858 = vunpack.c.h.b16 %v262
    %v859 = vunpack.c.l.b16 %v263
    %v860 = vunpack.c.h.b16 %v263
    %v861 = vunpack.c.l.b16 %v264
    %v862 = vunpack.c.h.b16 %v264
    %v863 = vunpack.c.l.b16 %v265
    %v864 = vunpack.c.h.b16 %v265
    %v865 = vunpack.c.l.b16 %v266
    %v866 = vunpack.c.h.b16 %v266
    %v867 = vunpack.c.l.b16 %v267
    %v868 = vunpack.c.h.b16 %v267
    %v869 = vunpack.c.l.b16 %v268
    %v870 = vunpack.c.h.b16 %v268
    %v871 = vunpack.c.l.b16 %v269
    %v872 = vunpack.c.h.b16 %v269
    %v873 = vunpack.c.l.b16 %v270
    %v874 = vunpack.c.h.b16 %v270
    %v875 = vunpack.c.l.b16 %v271
    %v876 = vunpack.c.h.b16 %v271
    %v877 = vunpack.c.l.b16 %v272
    %v878 = vunpack.c.h.b16 %v272
    %v879 = vpack.c.b16 %v499, %v495
    %v880 = vpack.c.b16 %v500, %v496
    %v881 = vpack.c.b16 %v501, %v497
    %v882 = vpack.c.b16 %v502, %v498
    %v883 = vpack.c.b16 %v507, %v503
    %v884 = vpack.c.b16 %v508, %v504
    %v885 = vpack.c.b16 %v509, %v505
    %v886 = vpack.c.b16 %v510, %v506
    %v887 = vpack.c.b16 %v515, %v511
    %v888 = vpack.c.b16 %v516, %v512
    %v889 = vpack.c.b16 %v517, %v513
    %v890 = vpack.c.b16 %v518, %v514
    %v891 = vpack.c.b16 %v523, %v519
    %v892 = vpack.c.b16 %v524, %v520
    %v893 = vpack.c.b16 %v525, %v521
    %v894 = vpack.c.b16 %v526, %v522
    %v895 = vpack.c.b16 %v531, %v527
    %v896 = vpack.c.b16 %v532, %v528
    %v897 = vpack.c.b16 %v533, %v529
    %v898 = vpack.c.b16 %v534, %v530
    %v899 = vpack.c.b16 %v539, %v535
    %v900 = vpack.c.b16 %v540, %v536
    %v901 = vpack.c.b16 %v541, %v537
    %v902 = vpack.c.b16 %v542, %v538
    %v903 = vpack.c.b16 %v547, %v543
    %v904 = vpack.c.b16 %v548, %v544
    %v905 = vpack.c.b16 %v549, %v545
    %v906 = vpack.c.b16 %v550, %v546
    %v907 = vpack.c.b16 %v555, %v551
    %v908 = vpack.c.b16 %v556, %v552
    %v909 = vpack.c.b16 %v557, %v553
    %v910 = vpack.c.b16 %v558, %v554
    %v911 = vpack.c.b16 %v563, %v559
    %v912 = vpack.c.b16 %v564, %v560
    %v913 = vpack.c.b16 %v565, %v561
    %v914 = vpack.c.b16 %v566, %v562
    %v915 = vpack.c.b16 %v571, %v567
    %v916 = vpack.c.b16 %v572, %v568
    %v917 = vpack.c.b16 %v573, %v569
    %v918 = vpack.c.b16 %v574, %v570
    %v919 = vpack.c.b16 %v579, %v575
    %v920 = vpack.c.b16 %v580, %v576
    %v921 = vpack.c.b16 %v581, %v577
    %v922 = vpack.c.b16 %v582, %v578
    %v923 = vpack.c.b16 %v587, %v583
    %v924 = vpack.c.b16 %v588, %v584
    %v925 = vpack.c.b16 %v589, %v585
    %v926 = vpack.c.b16 %v590, %v586
    %v927 = vpack.c.b16 %v595, %v591
    %v928 = vpack.c.b16 %v596, %v592
    %v929 = vpack.c.b16 %v597, %v593
    %v930 = vpack.c.b16 %v598, %v594
    %v931 = vpack.c.b16 %v603, %v599
    %v932 = vpack.c.b16 %v604, %v600
    %v933 = vpack.c.b16 %v605, %v601
    %v934 = vpack.c.b16 %v606, %v602
    %v935 = vpack.c.b16 %v611, %v607
    %v936 = vpack.c.b16 %v612, %v608
    %v937 = vpack.c.b16 %v613, %v609
    %v938 = vpack.c.b16 %v614, %v610
    %v939 = vpack.c.b16 %v619, %v615
    %v940 = vpack.c.b16 %v620, %v616
    %v941 = vpack.c.b16 %v621, %v617
    %v942 = vpack.c.b16 %v622, %v618
    %v943 = vpack.c.b16 %v627, %v623
    %v944 = vpack.c.b16 %v628, %v624
    %v945 = vpack.c.b16 %v629, %v625
    %v946 = vpack.c.b16 %v630, %v626
    %v947 = vpack.c.b16 %v635, %v631
    %v948 = vpack.c.b16 %v636, %v632
    %v949 = vpack.c.b16 %v637, %v633
    %v950 = vpack.c.b16 %v638, %v634
    %v951 = vpack.c.b16 %v643, %v639
    %v952 = vpack.c.b16 %v644, %v640
    %v953 = vpack.c.b16 %v645, %v641
    %v954 = vpack.c.b16 %v646, %v642
    %v955 = vpack.c.b16 %v651, %v647
    %v956 = vpack.c.b16 %v652, %v648
    %v957 = vpack.c.b16 %v653, %v649
    %v958 = vpack.c.b16 %v654, %v650
    %v959 = vpack.c.b16 %v659, %v655
    %v960 = vpack.c.b16 %v660, %v656
    %v961 = vpack.c.b16 %v661, %v657
    %v962 = vpack.c.b16 %v662, %v658
    %v963 = vpack.c.b16 %v667, %v663
    %v964 = vpack.c.b16 %v668, %v664
    %v965 = vpack.c.b16 %v669, %v665
    %v966 = vpack.c.b16 %v670, %v666
    %v967 = vpack.c.b16 %v675, %v671
    %v968 = vpack.c.b16 %v676, %v672
    %v969 = vpack.c.b16 %v677, %v673
    %v970 = vpack.c.b16 %v678, %v674
    %v971 = vpack.c.b16 %v683, %v679
    %v972 = vpack.c.b16 %v684, %v680
    %v973 = vpack.c.b16 %v685, %v681
    %v974 = vpack.c.b16 %v686, %v682
    %v975 = vpack.c.b16 %v691, %v687
    %v976 = vpack.c.b16 %v692, %v688
    %v977 = vpack.c.b16 %v693, %v689
    %v978 = vpack.c.b16 %v694, %v690
    %v979 = vpack.c.b16 %v699, %v695
    %v980 = vpack.c.b16 %v700, %v696
    %v981 = vpack.c.b16 %v701, %v697
    %v982 = vpack.c.b16 %v702, %v698
    %v983 = vpack.c.b16 %v707, %v703
    %v984 = vpack.c.b16 %v708, %v704
    %v985 = vpack.c.b16 %v709, %v705
    %v986 = vpack.c.b16 %v710, %v706
    %v987 = vpack.c.b16 %v715, %v711
    %v988 = vpack.c.b16 %v716, %v712
    %v989 = vpack.c.b16 %v717, %v713
    %v990 = vpack.c.b16 %v718, %v714
    %v991 = vpack.c.b16 %v723, %v719
    %v992 = vpack.c.b16 %v724, %v720
    %v993 = vpack.c.b16 %v725, %v721
    %v994 = vpack.c.b16 %v726, %v722
    %v995 = vpack.c.b16 %v731, %v727
    %v996 = vpack.c.b16 %v732, %v728
    %v997 = vpack.c.b16 %v733, %v729
    %v998 = vpack.c.b16 %v734, %v730
    %v999 = vpack.c.b16 %v739, %v735
    %v1000 = vpack.c.b16 %v740, %v736
    %v1001 = vpack.c.b16 %v741, %v737
    %v1002 = vpack.c.b16 %v742, %v738
    %v1003 = vpack.c.b16 %v747, %v743
    %v1004 = vpack.c.b16 %v748, %v744
    %v1005 = vpack.c.b16 %v749, %v745
    %v1006 = vpack.c.b16 %v750, %v746
    %v1007 = vpack.c.b16 %v755, %v751
    %v1008 = vpack.c.b16 %v756, %v752
    %v1009 = vpack.c.b16 %v757, %v753
    %v1010 = vpack.c.b16 %v758, %v754
    %v1011 = vpack.c.b16 %v763, %v759
    %v1012 = vpack.c.b16 %v764, %v760
    %v1013 = vpack.c.b16 %v765, %v761
    %v1014 = vpack.c.b16 %v766, %v762
    %v1015 = vpack.c.b16 %v771, %v767
    %v1016 = vpack.c.b16 %v772, %v768
    %v1017 = vpack.c.b16 %v773, %v769
    %v1018 = vpack.c.b16 %v774, %v770
    %v1019 = vpack.c.b16 %v779, %v775
    %v1020 = vpack.c.b16 %v780, %v776
    %v1021 = vpack.c.b16 %v781, %v777
    %v1022 = vpack.c.b16 %v782, %v778
    %v1023 = vpack.c.b16 %v787, %v783
    %v1024 = vpack.c.b16 %v788, %v784
    %v1025 = vpack.c.b16 %v789, %v785
    %v1026 = vpack.c.b16 %v790, %v786
    %v1027 = vpack.c.b16 %v795, %v791
    %v1028 = vpack.c.b16 %v796, %v792
    %v1029 = vpack.c.b16 %v797, %v793
    %v1030 = vpack.c.b16 %v798, %v794
    %v1031 = vpack.c.b16 %v803, %v799
    %v1032 = vpack.c.b16 %v804, %v800
    %v1033 = vpack.c.b16 %v805, %v801
    %v1034 = vpack.c.b16 %v806, %v802
    %v1035 = vpack.c.b16 %v811, %v807
    %v1036 = vpack.c.b16 %v812, %v808
    %v1037 = vpack.c.b16 %v813, %v809
    %v1038 = vpack.c.b16 %v814, %v810
    %v1039 = vpack.c.b16 %v819, %v815
    %v1040 = vpack.c.b16 %v820, %v816
    %v1041 = vpack.c.b16 %v821, %v817
    %v1042 = vpack.c.b16 %v822, %v818
    %v1043 = vpack.c.b16 %v827, %v823
    %v1044 = vpack.c.b16 %v828, %v824
    %v1045 = vpack.c.b16 %v829, %v825
    %v1046 = vpack.c.b16 %v830, %v826
    %v1047 = vpack.c.b16 %v835, %v831
    %v1048 = vpack.c.b16 %v836, %v832
    %v1049 = vpack.c.b16 %v837, %v833
    %v1050 = vpack.c.b16 %v838, %v834
    %v1051 = vpack.c.b16 %v843, %v839
    %v1052 = vpack.c.b16 %v844, %v840
    %v1053 = vpack.c.b16 %v845, %v841
    %v1054 = vpack.c.b16 %v846, %v842
    %v1055 = vpack.c.b16 %v851, %v847
    %v1056 = vpack.c.b16 %v852, %v848
    %v1057 = vpack.c.b16 %v853, %v849
    %v1058 = vpack.c.b16 %v854, %v850
    %v1059 = vpack.c.b16 %v859, %v855
    %v1060 = vpack.c.b16 %v860, %v856
    %v1061 = vpack.c.b16 %v861, %v857
    %v1062 = vpack.c.b16 %v862, %v858
    %v1063 = vpack.c.b16 %v867, %v863
    %v1064 = vpack.c.b16 %v868, %v864
    %v1065 = vpack.c.b16 %v869, %v865
    %v1066 = vpack.c.b16 %v870, %v866
    %v1067 = vpack.c.b16 %v875, %v871
    %v1068 = vpack.c.b16 %v876, %v872
    %v1069 = vpack.c.b16 %v877, %v873
    %v1070 = vpack.c.b16 %v878, %v874
    %1263 = vmatprep.subr.bf16.mxu0 %v880
    %1264 = vmatpush1.bf16.msra.mxu0 %v879
    %1265 = vmatprep.subr.bf16.mxu0 %v884
    %1266 = vmatpush1.bf16.msra.mxu0 %v883
    %1267 = vmatprep.subr.bf16.mxu0 %v888
    %1268 = vmatpush1.bf16.msra.mxu0 %v887
    %1269 = vmatprep.subr.bf16.mxu0 %v892
    %1270 = vmatpush1.bf16.msra.mxu0 %v891
    %1271 = vmatprep.subr.bf16.mxu0 %v896
    %1272 = vmatpush1.bf16.msra.mxu0 %v895
    %1273 = vmatprep.subr.bf16.mxu0 %v900
    %1274 = vmatpush1.bf16.msra.mxu0 %v899
    %1275 = vmatprep.subr.bf16.mxu0 %v904
    %1276 = vmatpush1.bf16.msra.mxu0 %v903
    %1277 = vmatprep.subr.bf16.mxu0 %v908
    %1278 = vmatpush1.bf16.msra.mxu0 %v907
    %1279 = vmatprep.subr.bf16.mxu0 %v912
    %1280 = vmatpush1.bf16.msra.mxu0 %v911
    %1281 = vmatprep.subr.bf16.mxu0 %v916
    %1282 = vmatpush1.bf16.msra.mxu0 %v915
    %1283 = vmatprep.subr.bf16.mxu0 %v920
    %1284 = vmatpush1.bf16.msra.mxu0 %v919
    %1285 = vmatprep.subr.bf16.mxu0 %v924
    %1286 = vmatpush1.bf16.msra.mxu0 %v923
    %1287 = vmatprep.subr.bf16.mxu0 %v928
    %1288 = vmatpush1.bf16.msra.mxu0 %v927
    %1289 = vmatprep.subr.bf16.mxu0 %v932
    %1290 = vmatpush1.bf16.msra.mxu0 %v931
    %1291 = vmatprep.subr.bf16.mxu0 %v936
    %1292 = vmatpush1.bf16.msra.mxu0 %v935
    %1293 = vmatprep.subr.bf16.mxu0 %v940
    %1294 = vmatpush1.bf16.msra.mxu0 %v939
    %1295 = vmatprep.mubr.bf16.mxu0 %v292
    %1296 = vmatmul.mubr.bf16.gmra.mrb[0].mxu0 %v291
    %v1297 = vpop.f32.mrb[0].mxu0
    %v1298 = vadd.f32 0.0, %v1297
    %v1299 = vpop.f32.mrb[0].mxu0
    %v1300 = vadd.f32 0.0, %v1299
    %v1301 = vpop.f32.mrb[0].mxu0
    %v1302 = vadd.f32 0.0, %v1301
    %v1303 = vpop.f32.mrb[0].mxu0
    %v1304 = vadd.f32 0.0, %v1303
    %1305 = vdwg.mxu0
    %1306 = vmatprep.subr.bf16.mxu0 %v944
    %1307 = vmatpush1.bf16.msra.mxu0 %v943
    %1308 = vmatprep.subr.bf16.mxu0 %v948
    %1309 = vmatpush1.bf16.msra.mxu0 %v947
    %1310 = vmatprep.subr.bf16.mxu0 %v952
    %1311 = vmatpush1.bf16.msra.mxu0 %v951
    %1312 = vmatprep.subr.bf16.mxu0 %v956
    %1313 = vmatpush1.bf16.msra.mxu0 %v955
    %1314 = vmatprep.subr.bf16.mxu0 %v960
    %1315 = vmatpush1.bf16.msra.mxu0 %v959
    %1316 = vmatprep.subr.bf16.mxu0 %v964
    %1317 = vmatpush1.bf16.msra.mxu0 %v963
    %1318 = vmatprep.subr.bf16.mxu0 %v968
    %1319 = vmatpush1.bf16.msra.mxu0 %v967
    %1320 = vmatprep.subr.bf16.mxu0 %v972
    %1321 = vmatpush1.bf16.msra.mxu0 %v971
    %1322 = vmatprep.subr.bf16.mxu0 %v976
    %1323 = vmatpush1.bf16.msra.mxu0 %v975
    %1324 = vmatprep.subr.bf16.mxu0 %v980
    %1325 = vmatpush1.bf16.msra.mxu0 %v979
    %1326 = vmatprep.subr.bf16.mxu0 %v984
    %1327 = vmatpush1.bf16.msra.mxu0 %v983
    %1328 = vmatprep.subr.bf16.mxu0 %v988
    %1329 = vmatpush1.bf16.msra.mxu0 %v987
    %1330 = vmatprep.subr.bf16.mxu0 %v992
    %1331 = vmatpush1.bf16.msra.mxu0 %v991
    %1332 = vmatprep.subr.bf16.mxu0 %v996
    %1333 = vmatpush1.bf16.msra.mxu0 %v995
    %1334 = vmatprep.subr.bf16.mxu0 %v1000
    %1335 = vmatpush1.bf16.msra.mxu0 %v999
    %1336 = vmatprep.subr.bf16.mxu0 %v1004
    %1337 = vmatpush1.bf16.msra.mxu0 %v1003
    %1338 = vmatprep.mubr.bf16.mxu0 %v294
    %1339 = vmatmul.mubr.bf16.gmra.mrb[0].mxu0 %v293
    %v1340 = vpop.f32.mrb[0].mxu0
    %v1341 = vadd.f32 %v1298, %v1340
    %v1342 = vpop.f32.mrb[0].mxu0
    %v1343 = vadd.f32 %v1300, %v1342
    %v1344 = vpop.f32.mrb[0].mxu0
    %v1345 = vadd.f32 %v1302, %v1344
    %v1346 = vpop.f32.mrb[0].mxu0
    %v1347 = vadd.f32 %v1304, %v1346
    %1348 = vdwg.mxu0
    %1349 = vmatprep.subr.bf16.mxu0 %v1008
    %1350 = vmatpush1.bf16.msra.mxu0 %v1007
    %1351 = vmatprep.subr.bf16.mxu0 %v1012
    %1352 = vmatpush1.bf16.msra.mxu0 %v1011
    %1353 = vmatprep.subr.bf16.mxu0 %v1016
    %1354 = vmatpush1.bf16.msra.mxu0 %v1015
    %1355 = vmatprep.subr.bf16.mxu0 %v1020
    %1356 = vmatpush1.bf16.msra.mxu0 %v1019
    %1357 = vmatprep.subr.bf16.mxu0 %v1024
    %1358 = vmatpush1.bf16.msra.mxu0 %v1023
    %1359 = vmatprep.subr.bf16.mxu0 %v1028
    %1360 = vmatpush1.bf16.msra.mxu0 %v1027
    %1361 = vmatprep.subr.bf16.mxu0 %v1032
    %1362 = vmatpush1.bf16.msra.mxu0 %v1031
    %1363 = vmatprep.subr.bf16.mxu0 %v1036
    %1364 = vmatpush1.bf16.msra.mxu0 %v1035
    %1365 = vmatprep.subr.bf16.mxu0 %v1040
    %1366 = vmatpush1.bf16.msra.mxu0 %v1039
    %1367 = vmatprep.subr.bf16.mxu0 %v1044
    %1368 = vmatpush1.bf16.msra.mxu0 %v1043
    %1369 = vmatprep.subr.bf16.mxu0 %v1048
    %1370 = vmatpush1.bf16.msra.mxu0 %v1047
    %1371 = vmatprep.subr.bf16.mxu0 %v1052
    %1372 = vmatpush1.bf16.msra.mxu0 %v1051
    %1373 = vmatprep.subr.bf16.mxu0 %v1056
    %1374 = vmatpush1.bf16.msra.mxu0 %v1055
    %1375 = vmatprep.subr.bf16.mxu0 %v1060
    %1376 = vmatpush1.bf16.msra.mxu0 %v1059
    %1377 = vmatprep.subr.bf16.mxu0 %v1064
    %1378 = vmatpush1.bf16.msra.mxu0 %v1063
    %1379 = vmatprep.subr.bf16.mxu0 %v1068
    %1380 = vmatpush1.bf16.msra.mxu0 %v1067
    %1381 = vmatprep.mubr.bf16.mxu0 %v296
    %1382 = vmatmul.mubr.bf16.gmra.mrb[0].mxu0 %v295
    %v1383 = vpop.f32.mrb[0].mxu0
    %v1384 = vadd.f32 %v1341, %v1383
    %v1385 = vpop.f32.mrb[0].mxu0
    %v1386 = vadd.f32 %v1343, %v1385
    %v1387 = vpop.f32.mrb[0].mxu0
    %v1388 = vadd.f32 %v1345, %v1387
    %v1389 = vpop.f32.mrb[0].mxu0
    %v1390 = vadd.f32 %v1347, %v1389
    %1391 = vdwg.mxu0
    %1392 = vmatprep.subr.bf16.mxu0 %v882
    %1393 = vmatpush1.bf16.msra.mxu0 %v881
    %1394 = vmatprep.subr.bf16.mxu0 %v886
    %1395 = vmatpush1.bf16.msra.mxu0 %v885
    %1396 = vmatprep.subr.bf16.mxu0 %v890
    %1397 = vmatpush1.bf16.msra.mxu0 %v889
    %1398 = vmatprep.subr.bf16.mxu0 %v894
    %1399 = vmatpush1.bf16.msra.mxu0 %v893
    %1400 = vmatprep.subr.bf16.mxu0 %v898
    %1401 = vmatpush1.bf16.msra.mxu0 %v897
    %1402 = vmatprep.subr.bf16.mxu0 %v902
    %1403 = vmatpush1.bf16.msra.mxu0 %v901
    %1404 = vmatprep.subr.bf16.mxu0 %v906
    %1405 = vmatpush1.bf16.msra.mxu0 %v905
    %1406 = vmatprep.subr.bf16.mxu0 %v910
    %1407 = vmatpush1.bf16.msra.mxu0 %v909
    %1408 = vmatprep.subr.bf16.mxu0 %v914
    %1409 = vmatpush1.bf16.msra.mxu0 %v913
    %1410 = vmatprep.subr.bf16.mxu0 %v918
    %1411 = vmatpush1.bf16.msra.mxu0 %v917
    %1412 = vmatprep.subr.bf16.mxu0 %v922
    %1413 = vmatpush1.bf16.msra.mxu0 %v921
    %1414 = vmatprep.subr.bf16.mxu0 %v926
    %1415 = vmatpush1.bf16.msra.mxu0 %v925
    %1416 = vmatprep.subr.bf16.mxu0 %v930
    %1417 = vmatpush1.bf16.msra.mxu0 %v929
    %1418 = vmatprep.subr.bf16.mxu0 %v934
    %1419 = vmatpush1.bf16.msra.mxu0 %v933
    %1420 = vmatprep.subr.bf16.mxu0 %v938
    %1421 = vmatpush1.bf16.msra.mxu0 %v937
    %1422 = vmatprep.subr.bf16.mxu0 %v942
    %1423 = vmatpush1.bf16.msra.mxu0 %v941
    %1424 = vmatprep.mubr.bf16.mxu0 %v292
    %1425 = vmatmul.mubr.bf16.gmra.mrb[0].mxu0 %v291
    %v1426 = vpop.f32.mrb[0].mxu0
    %v1427 = vadd.f32 0.0, %v1426
    %v1428 = vpop.f32.mrb[0].mxu0
    %v1429 = vadd.f32 0.0, %v1428
    %v1430 = vpop.f32.mrb[0].mxu0
    %v1431 = vadd.f32 0.0, %v1430
    %v1432 = vpop.f32.mrb[0].mxu0
    %v1433 = vadd.f32 0.0, %v1432
    %1434 = vdwg.mxu0
    %1435 = vmatprep.subr.bf16.mxu0 %v946
    %1436 = vmatpush1.bf16.msra.mxu0 %v945
    %1437 = vmatprep.subr.bf16.mxu0 %v950
    %1438 = vmatpush1.bf16.msra.mxu0 %v949
    %1439 = vmatprep.subr.bf16.mxu0 %v954
    %1440 = vmatpush1.bf16.msra.mxu0 %v953
    %1441 = vmatprep.subr.bf16.mxu0 %v958
    %1442 = vmatpush1.bf16.msra.mxu0 %v957
    %1443 = vmatprep.subr.bf16.mxu0 %v962
    %1444 = vmatpush1.bf16.msra.mxu0 %v961
    %1445 = vmatprep.subr.bf16.mxu0 %v966
    %1446 = vmatpush1.bf16.msra.mxu0 %v965
    %1447 = vmatprep.subr.bf16.mxu0 %v970
    %1448 = vmatpush1.bf16.msra.mxu0 %v969
    %1449 = vmatprep.subr.bf16.mxu0 %v974
    %1450 = vmatpush1.bf16.msra.mxu0 %v973
    %1451 = vmatprep.subr.bf16.mxu0 %v978
    %1452 = vmatpush1.bf16.msra.mxu0 %v977
    %1453 = vmatprep.subr.bf16.mxu0 %v982
    %1454 = vmatpush1.bf16.msra.mxu0 %v981
    %1455 = vmatprep.subr.bf16.mxu0 %v986
    %1456 = vmatpush1.bf16.msra.mxu0 %v985
    %1457 = vmatprep.subr.bf16.mxu0 %v990
    %1458 = vmatpush1.bf16.msra.mxu0 %v989
    %1459 = vmatprep.subr.bf16.mxu0 %v994
    %1460 = vmatpush1.bf16.msra.mxu0 %v993
    %1461 = vmatprep.subr.bf16.mxu0 %v998
    %1462 = vmatpush1.bf16.msra.mxu0 %v997
    %1463 = vmatprep.subr.bf16.mxu0 %v1002
    %1464 = vmatpush1.bf16.msra.mxu0 %v1001
    %1465 = vmatprep.subr.bf16.mxu0 %v1006
    %1466 = vmatpush1.bf16.msra.mxu0 %v1005
    %1467 = vmatprep.mubr.bf16.mxu0 %v294
    %1468 = vmatmul.mubr.bf16.gmra.mrb[0].mxu0 %v293
    %v1469 = vpop.f32.mrb[0].mxu0
    %v1470 = vadd.f32 %v1427, %v1469
    %v1471 = vpop.f32.mrb[0].mxu0
    %v1472 = vadd.f32 %v1429, %v1471
    %v1473 = vpop.f32.mrb[0].mxu0
    %v1474 = vadd.f32 %v1431, %v1473
    %v1475 = vpop.f32.mrb[0].mxu0
    %v1476 = vadd.f32 %v1433, %v1475
    %1477 = vdwg.mxu0
    %1478 = vmatprep.subr.bf16.mxu0 %v1010
    %1479 = vmatpush1.bf16.msra.mxu0 %v1009
    %1480 = vmatprep.subr.bf16.mxu0 %v1014
    %1481 = vmatpush1.bf16.msra.mxu0 %v1013
    %1482 = vmatprep.subr.bf16.mxu0 %v1018
    %1483 = vmatpush1.bf16.msra.mxu0 %v1017
    %1484 = vmatprep.subr.bf16.mxu0 %v1022
    %1485 = vmatpush1.bf16.msra.mxu0 %v1021
    %1486 = vmatprep.subr.bf16.mxu0 %v1026
    %1487 = vmatpush1.bf16.msra.mxu0 %v1025
    %1488 = vmatprep.subr.bf16.mxu0 %v1030
    %1489 = vmatpush1.bf16.msra.mxu0 %v1029
    %1490 = vmatprep.subr.bf16.mxu0 %v1034
    %1491 = vmatpush1.bf16.msra.mxu0 %v1033
    %1492 = vmatprep.subr.bf16.mxu0 %v1038
    %1493 = vmatpush1.bf16.msra.mxu0 %v1037
    %1494 = vmatprep.subr.bf16.mxu0 %v1042
    %1495 = vmatpush1.bf16.msra.mxu0 %v1041
    %1496 = vmatprep.subr.bf16.mxu0 %v1046
    %1497 = vmatpush1.bf16.msra.mxu0 %v1045
    %1498 = vmatprep.subr.bf16.mxu0 %v1050
    %1499 = vmatpush1.bf16.msra.mxu0 %v1049
    %1500 = vmatprep.subr.bf16.mxu0 %v1054
    %1501 = vmatpush1.bf16.msra.mxu0 %v1053
    %1502 = vmatprep.subr.bf16.mxu0 %v1058
    %1503 = vmatpush1.bf16.msra.mxu0 %v1057
    %1504 = vmatprep.subr.bf16.mxu0 %v1062
    %1505 = vmatpush1.bf16.msra.mxu0 %v1061
    %1506 = vmatprep.subr.bf16.mxu0 %v1066
    %1507 = vmatpush1.bf16.msra.mxu0 %v1065
    %1508 = vmatprep.subr.bf16.mxu0 %v1070
    %1509 = vmatpush1.bf16.msra.mxu0 %v1069
    %1510 = vmatprep.mubr.bf16.mxu0 %v296
    %1511 = vmatmul.mubr.bf16.gmra.mrb[0].mxu0 %v295
    %v1512 = vpop.f32.mrb[0].mxu0
    %v1513 = vadd.f32 %v1470, %v1512
    %v1514 = vpop.f32.mrb[0].mxu0
    %v1515 = vadd.f32 %v1472, %v1514
    %v1516 = vpop.f32.mrb[0].mxu0
    %v1517 = vadd.f32 %v1474, %v1516
    %v1518 = vpop.f32.mrb[0].mxu0
    %v1519 = vadd.f32 %v1476, %v1518
    %1520 = vdwg.mxu0
    %v1521 = vadd.f32 %v67, %v1384
    %v1522 = vadd.f32 %v68, %v1386
    %v1523 = vadd.f32 %v69, %v1513
    %v1524 = vadd.f32 %v70, %v1515
    %v1525 = vadd.f32 %v71, %v1388
    %v1526 = vadd.f32 %v72, %v1390
    %v1527 = vadd.f32 %v73, %v1517
    %v1528 = vadd.f32 %v74, %v1519
    %1529 = vst [vmem:[#allocation2] sm:$0xff] %v1521
    %1530 = vst [vmem:[#allocation2 + $0x8] sm:$0xff] %v1522
    %1531 = vst [vmem:[#allocation2 + $0x10] sm:$0xff] %v1523
    %1532 = vst [vmem:[#allocation2 + $0x18] sm:$0xff] %v1524
    %1533 = vst [vmem:[#allocation2 + $0x20] sm:$0xff] %v1525
    %1534 = vst [vmem:[#allocation2 + $0x28] sm:$0xff] %v1526
    %1535 = vst [vmem:[#allocation2 + $0x30] sm:$0xff] %v1527
    %1536 = vst [vmem:[#allocation2 + $0x38] sm:$0xff] %v1528
    // Predicated region
    $region54: #{mil_gated_attention_forward.1} parent=1 // pred_check
      %p1537 = pneg %p43
    $region55: #{mil_gated_attention_forward.1} parent=1 // pred_check_branch
      %1539 = sbr.rel (%p1537) target = $region57
    $region56: #{mil_gated_attention_forward.1} parent=1 // pred_region
      %v1540 = vld [vmem:[#allocation2] sm:$0xff]
      %v1541 = vld [vmem:[#allocation2 + $0x8] sm:$0xff]
      %v1542 = vld [vmem:[#allocation2 + $0x10] sm:$0xff]
      %v1543 = vld [vmem:[#allocation2 + $0x18] sm:$0xff]
      %v1544 = vld [vmem:[#allocation2 + $0x20] sm:$0xff]
      %v1545 = vld [vmem:[#allocation2 + $0x28] sm:$0xff]
      %v1546 = vld [vmem:[#allocation2 + $0x30] sm:$0xff]
      %v1547 = vld [vmem:[#allocation2 + $0x38] sm:$0xff]
      %v1548 = vld [vmem:[%s2] sm:$0xf]
      %v1550 = vlaneseq
      %v1551 = vshrl.u32 %v1550, 7
      %v1552 = vsub.s32 0, %v1551
      %v1553 = vrot.slane %v1548, %v1552
      %v1554 = vlaneseq
      %v1555 = vshrl.u32 %v1554, 7
      %v1556 = vsub.s32 1, %v1555
      %v1557 = vrot.slane %v1548, %v1556
      %v1558 = vlaneseq
      %v1559 = vshrl.u32 %v1558, 7
      %v1560 = vsub.s32 2, %v1559
      %v1561 = vrot.slane %v1548, %v1560
      %v1562 = vlaneseq
      %v1563 = vshrl.u32 %v1562, 7
      %v1564 = vsub.s32 3, %v1563
      %v1565 = vrot.slane %v1548, %v1564
      %v1570 = vadd.f32 %v1540, %v1553
      %v1571 = vadd.f32 %v1541, %v1557
      %v1572 = vadd.f32 %v1542, %v1561
      %v1573 = vadd.f32 %v1543, %v1565
      %v1574 = vadd.f32 %v1544, %v1553
      %v1575 = vadd.f32 %v1545, %v1557
      %v1576 = vadd.f32 %v1546, %v1561
      %v1577 = vadd.f32 %v1547, %v1565
      %v1578 = vpack.c.bf16 %v1574, %v1570
      %v1579 = vpack.c.bf16 %v1575, %v1571
      %v1580 = vpack.c.bf16 %v1576, %v1572
      %v1581 = vpack.c.bf16 %v1577, %v1573
      %v1582 = vld [vmem:[%s3] sm:$0xf]
      %v1583 = vld [vmem:[%s3 + $0x4] sm:$0xf]
      %v1584 = vld [vmem:[%s3 + $0x8] sm:$0xf]
      %v1585 = vld [vmem:[%s3 + $0xc] sm:$0xf]
      %v1586 = vld [vmem:[%s3 + $0x10] sm:$0xf]
      %v1587 = vld [vmem:[%s3 + $0x14] sm:$0xf]
      %v1588 = vld [vmem:[%s3 + $0x18] sm:$0xf]
      %v1589 = vld [vmem:[%s3 + $0x1c] sm:$0xf]
      %v1590 = vld [vmem:[%s3 + $0x20] sm:$0xf]
      %v1591 = vld [vmem:[%s3 + $0x24] sm:$0xf]
      %v1592 = vld [vmem:[%s3 + $0x28] sm:$0xf]
      %v1593 = vld [vmem:[%s3 + $0x2c] sm:$0xf]
      %v1594 = vld [vmem:[%s3 + $0x30] sm:$0xf]
      %v1595 = vld [vmem:[%s3 + $0x34] sm:$0xf]
      %v1596 = vld [vmem:[%s3 + $0x38] sm:$0xf]
      %v1597 = vld [vmem:[%s3 + $0x3c] sm:$0xf]
      %v1598 = vld [vmem:[%s3 + $0x40] sm:$0xf]
      %v1599 = vld [vmem:[%s3 + $0x44] sm:$0xf]
      %v1600 = vld [vmem:[%s3 + $0x48] sm:$0xf]
      %v1601 = vld [vmem:[%s3 + $0x4c] sm:$0xf]
      %v1602 = vld [vmem:[%s3 + $0x50] sm:$0xf]
      %v1603 = vld [vmem:[%s3 + $0x54] sm:$0xf]
      %v1604 = vld [vmem:[%s3 + $0x58] sm:$0xf]
      %v1605 = vld [vmem:[%s3 + $0x5c] sm:$0xf]
      %v1606 = vld [vmem:[%s3 + $0x60] sm:$0xf]
      %v1607 = vld [vmem:[%s3 + $0x64] sm:$0xf]
      %v1608 = vld [vmem:[%s3 + $0x68] sm:$0xf]
      %v1609 = vld [vmem:[%s3 + $0x6c] sm:$0xf]
      %v1610 = vld [vmem:[%s3 + $0x70] sm:$0xf]
      %v1611 = vld [vmem:[%s3 + $0x74] sm:$0xf]
      %v1612 = vld [vmem:[%s3 + $0x78] sm:$0xf]
      %v1613 = vld [vmem:[%s3 + $0x7c] sm:$0xf]
      %v1614 = vld [vmem:[%s3 + $0x80] sm:$0xf]
      %v1615 = vld [vmem:[%s3 + $0x84] sm:$0xf]
      %v1616 = vld [vmem:[%s3 + $0x88] sm:$0xf]
      %v1617 = vld [vmem:[%s3 + $0x8c] sm:$0xf]
      %v1618 = vld [vmem:[%s3 + $0x90] sm:$0xf]
      %v1619 = vld [vmem:[%s3 + $0x94] sm:$0xf]
      %v1620 = vld [vmem:[%s3 + $0x98] sm:$0xf]
      %v1621 = vld [vmem:[%s3 + $0x9c] sm:$0xf]
      %v1622 = vld [vmem:[%s3 + $0xa0] sm:$0xf]
      %v1623 = vld [vmem:[%s3 + $0xa4] sm:$0xf]
      %v1624 = vld [vmem:[%s3 + $0xa8] sm:$0xf]
      %v1625 = vld [vmem:[%s3 + $0xac] sm:$0xf]
      %v1626 = vld [vmem:[%s3 + $0xb0] sm:$0xf]
      %v1627 = vld [vmem:[%s3 + $0xb4] sm:$0xf]
      %v1628 = vld [vmem:[%s3 + $0xb8] sm:$0xf]
      %v1629 = vld [vmem:[%s3 + $0xbc] sm:$0xf]
      %v1630 = vld [vmem:[%s3 + $0xc0] sm:$0xf]
      %v1631 = vld [vmem:[%s3 + $0xc4] sm:$0xf]
      %v1632 = vld [vmem:[%s3 + $0xc8] sm:$0xf]
      %v1633 = vld [vmem:[%s3 + $0xcc] sm:$0xf]
      %v1634 = vld [vmem:[%s3 + $0xd0] sm:$0xf]
      %v1635 = vld [vmem:[%s3 + $0xd4] sm:$0xf]
      %v1636 = vld [vmem:[%s3 + $0xd8] sm:$0xf]
      %v1637 = vld [vmem:[%s3 + $0xdc] sm:$0xf]
      %v1638 = vld [vmem:[%s3 + $0xe0] sm:$0xf]
      %v1639 = vld [vmem:[%s3 + $0xe4] sm:$0xf]
      %v1640 = vld [vmem:[%s3 + $0xe8] sm:$0xf]
      %v1641 = vld [vmem:[%s3 + $0xec] sm:$0xf]
      %v1642 = vld [vmem:[%s3 + $0xf0] sm:$0xf]
      %v1643 = vld [vmem:[%s3 + $0xf4] sm:$0xf]
      %v1644 = vld [vmem:[%s3 + $0xf8] sm:$0xf]
      %v1645 = vld [vmem:[%s3 + $0xfc] sm:$0xf]
      %v1646 = vld [vmem:[%s4] sm:$0x1]
      %v1648 = vlaneseq
      %v1649 = vshrl.u32 %v1648, 7
      %v1650 = vsub.s32 0, %v1649
      %v1651 = vrot.slane %v1646, %v1650
      %v1717 = vunpack.c.l.b16 %v1582
      %v1718 = vunpack.c.l.b16 %v1583
      %v1719 = vunpack.c.l.b16 %v1584
      %v1720 = vunpack.c.l.b16 %v1585
      %v1721 = vunpack.c.l.b16 %v1586
      %v1722 = vunpack.c.l.b16 %v1587
      %v1723 = vunpack.c.l.b16 %v1588
      %v1724 = vunpack.c.l.b16 %v1589
      %v1725 = vunpack.c.l.b16 %v1590
      %v1726 = vunpack.c.l.b16 %v1591
      %v1727 = vunpack.c.l.b16 %v1592
      %v1728 = vunpack.c.l.b16 %v1593
      %v1729 = vunpack.c.l.b16 %v1594
      %v1730 = vunpack.c.l.b16 %v1595
      %v1731 = vunpack.c.l.b16 %v1596
      %v1732 = vunpack.c.l.b16 %v1597
      %v1733 = vunpack.c.l.b16 %v1598
      %v1734 = vunpack.c.l.b16 %v1599
      %v1735 = vunpack.c.l.b16 %v1600
      %v1736 = vunpack.c.l.b16 %v1601
      %v1737 = vunpack.c.l.b16 %v1602
      %v1738 = vunpack.c.l.b16 %v1603
      %v1739 = vunpack.c.l.b16 %v1604
      %v1740 = vunpack.c.l.b16 %v1605
      %v1741 = vunpack.c.l.b16 %v1606
      %v1742 = vunpack.c.l.b16 %v1607
      %v1743 = vunpack.c.l.b16 %v1608
      %v1744 = vunpack.c.l.b16 %v1609
      %v1745 = vunpack.c.l.b16 %v1610
      %v1746 = vunpack.c.l.b16 %v1611
      %v1747 = vunpack.c.l.b16 %v1612
      %v1748 = vunpack.c.l.b16 %v1613
      %v1749 = vunpack.c.l.b16 %v1614
      %v1750 = vunpack.c.l.b16 %v1615
      %v1751 = vunpack.c.l.b16 %v1616
      %v1752 = vunpack.c.l.b16 %v1617
      %v1753 = vunpack.c.l.b16 %v1618
      %v1754 = vunpack.c.l.b16 %v1619
      %v1755 = vunpack.c.l.b16 %v1620
      %v1756 = vunpack.c.l.b16 %v1621
      %v1757 = vunpack.c.l.b16 %v1622
      %v1758 = vunpack.c.l.b16 %v1623
      %v1759 = vunpack.c.l.b16 %v1624
      %v1760 = vunpack.c.l.b16 %v1625
      %v1761 = vunpack.c.l.b16 %v1626
      %v1762 = vunpack.c.l.b16 %v1627
      %v1763 = vunpack.c.l.b16 %v1628
      %v1764 = vunpack.c.l.b16 %v1629
      %v1765 = vunpack.c.l.b16 %v1630
      %v1766 = vunpack.c.l.b16 %v1631
      %v1767 = vunpack.c.l.b16 %v1632
      %v1768 = vunpack.c.l.b16 %v1633
      %v1769 = vunpack.c.l.b16 %v1634
      %v1770 = vunpack.c.l.b16 %v1635
      %v1771 = vunpack.c.l.b16 %v1636
      %v1772 = vunpack.c.l.b16 %v1637
      %v1773 = vunpack.c.l.b16 %v1638
      %v1774 = vunpack.c.l.b16 %v1639
      %v1775 = vunpack.c.l.b16 %v1640
      %v1776 = vunpack.c.l.b16 %v1641
      %v1777 = vunpack.c.l.b16 %v1642
      %v1778 = vunpack.c.l.b16 %v1643
      %v1779 = vunpack.c.l.b16 %v1644
      %v1780 = vunpack.c.l.b16 %v1645
      %v1781 = vpack.c.b16 %v1718, %v1717
      %v1782 = vpack.c.b16 %v1720, %v1719
      %v1783 = vpack.c.b16 %v1722, %v1721
      %v1784 = vpack.c.b16 %v1724, %v1723
      %v1785 = vpack.c.b16 %v1726, %v1725
      %v1786 = vpack.c.b16 %v1728, %v1727
      %v1787 = vpack.c.b16 %v1730, %v1729
      %v1788 = vpack.c.b16 %v1732, %v1731
      %v1789 = vpack.c.b16 %v1734, %v1733
      %v1790 = vpack.c.b16 %v1736, %v1735
      %v1791 = vpack.c.b16 %v1738, %v1737
      %v1792 = vpack.c.b16 %v1740, %v1739
      %v1793 = vpack.c.b16 %v1742, %v1741
      %v1794 = vpack.c.b16 %v1744, %v1743
      %v1795 = vpack.c.b16 %v1746, %v1745
      %v1796 = vpack.c.b16 %v1748, %v1747
      %v1797 = vpack.c.b16 %v1750, %v1749
      %v1798 = vpack.c.b16 %v1752, %v1751
      %v1799 = vpack.c.b16 %v1754, %v1753
      %v1800 = vpack.c.b16 %v1756, %v1755
      %v1801 = vpack.c.b16 %v1758, %v1757
      %v1802 = vpack.c.b16 %v1760, %v1759
      %v1803 = vpack.c.b16 %v1762, %v1761
      %v1804 = vpack.c.b16 %v1764, %v1763
      %v1805 = vpack.c.b16 %v1766, %v1765
      %v1806 = vpack.c.b16 %v1768, %v1767
      %v1807 = vpack.c.b16 %v1770, %v1769
      %v1808 = vpack.c.b16 %v1772, %v1771
      %v1809 = vpack.c.b16 %v1774, %v1773
      %v1810 = vpack.c.b16 %v1776, %v1775
      %v1811 = vpack.c.b16 %v1778, %v1777
      %v1812 = vpack.c.b16 %v1780, %v1779
      %1845 = vmatprep.subr.bf16.mxu0 0
      %1846 = vmatpush1.bf16.msra.mxu0 %v1781
      %1847 = vmatprep.subr.bf16.mxu0 0
      %1848 = vmatpush1.bf16.msra.mxu0 %v1782
      %1849 = vmatprep.subr.bf16.mxu0 0
      %1850 = vmatpush1.bf16.msra.mxu0 %v1783
      %1851 = vmatprep.subr.bf16.mxu0 0
      %1852 = vmatpush1.bf16.msra.mxu0 %v1784
      %1853 = vmatprep.subr.bf16.mxu0 0
      %1854 = vmatpush1.bf16.msra.mxu0 %v1785
      %1855 = vmatprep.subr.bf16.mxu0 0
      %1856 = vmatpush1.bf16.msra.mxu0 %v1786
      %1857 = vmatprep.subr.bf16.mxu0 0
      %1858 = vmatpush1.bf16.msra.mxu0 %v1787
      %1859 = vmatprep.subr.bf16.mxu0 0
      %1860 = vmatpush1.bf16.msra.mxu0 %v1788
      %1861 = vmatprep.subr.bf16.mxu0 0
      %1862 = vmatpush1.bf16.msra.mxu0 %v1789
      %1863 = vmatprep.subr.bf16.mxu0 0
      %1864 = vmatpush1.bf16.msra.mxu0 %v1790
      %1865 = vmatprep.subr.bf16.mxu0 0
      %1866 = vmatpush1.bf16.msra.mxu0 %v1791
      %1867 = vmatprep.subr.bf16.mxu0 0
      %1868 = vmatpush1.bf16.msra.mxu0 %v1792
      %1869 = vmatprep.subr.bf16.mxu0 0
      %1870 = vmatpush1.bf16.msra.mxu0 %v1793
      %1871 = vmatprep.subr.bf16.mxu0 0
      %1872 = vmatpush1.bf16.msra.mxu0 %v1794
      %1873 = vmatprep.subr.bf16.mxu0 0
      %1874 = vmatpush1.bf16.msra.mxu0 %v1795
      %1875 = vmatprep.subr.bf16.mxu0 0
      %1876 = vmatpush1.bf16.msra.mxu0 %v1796
      %1877 = vmatprep.mubr.bf16.mxu0 %v1579
      %1878 = vmatmul.mubr.bf16.gmra.mrb[0].mxu0 %v1578
      %v1879 = vpop.f32.mrb[0].mxu0
      %v1880 = vadd.f32 %v1651, %v1879
      %v1881 = vpop.f32.mrb[0].mxu0
      %v1882 = vpop.f32.mrb[0].mxu0
      %v1883 = vadd.f32 %v1651, %v1882
      %v1884 = vpop.f32.mrb[0].mxu0
      %1885 = vdwg.mxu0
      %1886 = vmatprep.subr.bf16.mxu0 0
      %1887 = vmatpush1.bf16.msra.mxu0 %v1797
      %1888 = vmatprep.subr.bf16.mxu0 0
      %1889 = vmatpush1.bf16.msra.mxu0 %v1798
      %1890 = vmatprep.subr.bf16.mxu0 0
      %1891 = vmatpush1.bf16.msra.mxu0 %v1799
      %1892 = vmatprep.subr.bf16.mxu0 0
      %1893 = vmatpush1.bf16.msra.mxu0 %v1800
      %1894 = vmatprep.subr.bf16.mxu0 0
      %1895 = vmatpush1.bf16.msra.mxu0 %v1801
      %1896 = vmatprep.subr.bf16.mxu0 0
      %1897 = vmatpush1.bf16.msra.mxu0 %v1802
      %1898 = vmatprep.subr.bf16.mxu0 0
      %1899 = vmatpush1.bf16.msra.mxu0 %v1803
      %1900 = vmatprep.subr.bf16.mxu0 0
      %1901 = vmatpush1.bf16.msra.mxu0 %v1804
      %1902 = vmatprep.subr.bf16.mxu0 0
      %1903 = vmatpush1.bf16.msra.mxu0 %v1805
      %1904 = vmatprep.subr.bf16.mxu0 0
      %1905 = vmatpush1.bf16.msra.mxu0 %v1806
      %1906 = vmatprep.subr.bf16.mxu0 0
      %1907 = vmatpush1.bf16.msra.mxu0 %v1807
      %1908 = vmatprep.subr.bf16.mxu0 0
      %1909 = vmatpush1.bf16.msra.mxu0 %v1808
      %1910 = vmatprep.subr.bf16.mxu0 0
      %1911 = vmatpush1.bf16.msra.mxu0 %v1809
      %1912 = vmatprep.subr.bf16.mxu0 0
      %1913 = vmatpush1.bf16.msra.mxu0 %v1810
      %1914 = vmatprep.subr.bf16.mxu0 0
      %1915 = vmatpush1.bf16.msra.mxu0 %v1811
      %1916 = vmatprep.subr.bf16.mxu0 0
      %1917 = vmatpush1.bf16.msra.mxu0 %v1812
      %1918 = vmatprep.mubr.bf16.mxu0 %v1581
      %1919 = vmatmul.mubr.bf16.gmra.mrb[0].mxu0 %v1580
      %v1920 = vpop.f32.mrb[0].mxu0
      %v1921 = vadd.f32 %v1880, %v1920
      %v1922 = vpop.f32.mrb[0].mxu0
      %v1923 = vpop.f32.mrb[0].mxu0
      %v1924 = vadd.f32 %v1883, %v1923
      %v1925 = vpop.f32.mrb[0].mxu0
      %1926 = vdwg.mxu0
      %v1927 = vtanh.pop %v1921
      %v1928 = vtanh.pop %v1924
      %v1929 = vld [vmem:[%s5] sm:$0xf]
      %v1930 = vld [vmem:[%s5 + $0x4] sm:$0xf]
      %v1931 = vld [vmem:[%s5 + $0x8] sm:$0xf]
      %v1932 = vld [vmem:[%s5 + $0xc] sm:$0xf]
      %v1933 = vld [vmem:[%s5 + $0x10] sm:$0xf]
      %v1934 = vld [vmem:[%s5 + $0x14] sm:$0xf]
      %v1935 = vld [vmem:[%s5 + $0x18] sm:$0xf]
      %v1936 = vld [vmem:[%s5 + $0x1c] sm:$0xf]
      %v1937 = vld [vmem:[%s5 + $0x20] sm:$0xf]
      %v1938 = vld [vmem:[%s5 + $0x24] sm:$0xf]
      %v1939 = vld [vmem:[%s5 + $0x28] sm:$0xf]
      %v1940 = vld [vmem:[%s5 + $0x2c] sm:$0xf]
      %v1941 = vld [vmem:[%s5 + $0x30] sm:$0xf]
      %v1942 = vld [vmem:[%s5 + $0x34] sm:$0xf]
      %v1943 = vld [vmem:[%s5 + $0x38] sm:$0xf]
      %v1944 = vld [vmem:[%s5 + $0x3c] sm:$0xf]
      %v1945 = vld [vmem:[%s5 + $0x40] sm:$0xf]
      %v1946 = vld [vmem:[%s5 + $0x44] sm:$0xf]
      %v1947 = vld [vmem:[%s5 + $0x48] sm:$0xf]
      %v1948 = vld [vmem:[%s5 + $0x4c] sm:$0xf]
      %v1949 = vld [vmem:[%s5 + $0x50] sm:$0xf]
      %v1950 = vld [vmem:[%s5 + $0x54] sm:$0xf]
      %v1951 = vld [vmem:[%s5 + $0x58] sm:$0xf]
      %v1952 = vld [vmem:[%s5 + $0x5c] sm:$0xf]
      %v1953 = vld [vmem:[%s5 + $0x60] sm:$0xf]
      %v1954 = vld [vmem:[%s5 + $0x64] sm:$0xf]
      %v1955 = vld [vmem:[%s5 + $0x68] sm:$0xf]
      %v1956 = vld [vmem:[%s5 + $0x6c] sm:$0xf]
      %v1957 = vld [vmem:[%s5 + $0x70] sm:$0xf]
      %v1958 = vld [vmem:[%s5 + $0x74] sm:$0xf]
      %v1959 = vld [vmem:[%s5 + $0x78] sm:$0xf]
      %v1960 = vld [vmem:[%s5 + $0x7c] sm:$0xf]
      %v1961 = vld [vmem:[%s5 + $0x80] sm:$0xf]
      %v1962 = vld [vmem:[%s5 + $0x84] sm:$0xf]
      %v1963 = vld [vmem:[%s5 + $0x88] sm:$0xf]
      %v1964 = vld [vmem:[%s5 + $0x8c] sm:$0xf]
      %v1965 = vld [vmem:[%s5 + $0x90] sm:$0xf]
      %v1966 = vld [vmem:[%s5 + $0x94] sm:$0xf]
      %v1967 = vld [vmem:[%s5 + $0x98] sm:$0xf]
      %v1968 = vld [vmem:[%s5 + $0x9c] sm:$0xf]
      %v1969 = vld [vmem:[%s5 + $0xa0] sm:$0xf]
      %v1970 = vld [vmem:[%s5 + $0xa4] sm:$0xf]
      %v1971 = vld [vmem:[%s5 + $0xa8] sm:$0xf]
      %v1972 = vld [vmem:[%s5 + $0xac] sm:$0xf]
      %v1973 = vld [vmem:[%s5 + $0xb0] sm:$0xf]
      %v1974 = vld [vmem:[%s5 + $0xb4] sm:$0xf]
      %v1975 = vld [vmem:[%s5 + $0xb8] sm:$0xf]
      %v1976 = vld [vmem:[%s5 + $0xbc] sm:$0xf]
      %v1977 = vld [vmem:[%s5 + $0xc0] sm:$0xf]
      %v1978 = vld [vmem:[%s5 + $0xc4] sm:$0xf]
      %v1979 = vld [vmem:[%s5 + $0xc8] sm:$0xf]
      %v1980 = vld [vmem:[%s5 + $0xcc] sm:$0xf]
      %v1981 = vld [vmem:[%s5 + $0xd0] sm:$0xf]
      %v1982 = vld [vmem:[%s5 + $0xd4] sm:$0xf]
      %v1983 = vld [vmem:[%s5 + $0xd8] sm:$0xf]
      %v1984 = vld [vmem:[%s5 + $0xdc] sm:$0xf]
      %v1985 = vld [vmem:[%s5 + $0xe0] sm:$0xf]
      %v1986 = vld [vmem:[%s5 + $0xe4] sm:$0xf]
      %v1987 = vld [vmem:[%s5 + $0xe8] sm:$0xf]
      %v1988 = vld [vmem:[%s5 + $0xec] sm:$0xf]
      %v1989 = vld [vmem:[%s5 + $0xf0] sm:$0xf]
      %v1990 = vld [vmem:[%s5 + $0xf4] sm:$0xf]
      %v1991 = vld [vmem:[%s5 + $0xf8] sm:$0xf]
      %v1992 = vld [vmem:[%s5 + $0xfc] sm:$0xf]
      %v1993 = vld [vmem:[%s6] sm:$0x1]
      %v1995 = vlaneseq
      %v1996 = vshrl.u32 %v1995, 7
      %v1997 = vsub.s32 0, %v1996
      %v1998 = vrot.slane %v1993, %v1997
      %v2064 = vunpack.c.l.b16 %v1929
      %v2065 = vunpack.c.l.b16 %v1930
      %v2066 = vunpack.c.l.b16 %v1931
      %v2067 = vunpack.c.l.b16 %v1932
      %v2068 = vunpack.c.l.b16 %v1933
      %v2069 = vunpack.c.l.b16 %v1934
      %v2070 = vunpack.c.l.b16 %v1935
      %v2071 = vunpack.c.l.b16 %v1936
      %v2072 = vunpack.c.l.b16 %v1937
      %v2073 = vunpack.c.l.b16 %v1938
      %v2074 = vunpack.c.l.b16 %v1939
      %v2075 = vunpack.c.l.b16 %v1940
      %v2076 = vunpack.c.l.b16 %v1941
      %v2077 = vunpack.c.l.b16 %v1942
      %v2078 = vunpack.c.l.b16 %v1943
      %v2079 = vunpack.c.l.b16 %v1944
      %v2080 = vunpack.c.l.b16 %v1945
      %v2081 = vunpack.c.l.b16 %v1946
      %v2082 = vunpack.c.l.b16 %v1947
      %v2083 = vunpack.c.l.b16 %v1948
      %v2084 = vunpack.c.l.b16 %v1949
      %v2085 = vunpack.c.l.b16 %v1950
      %v2086 = vunpack.c.l.b16 %v1951
      %v2087 = vunpack.c.l.b16 %v1952
      %v2088 = vunpack.c.l.b16 %v1953
      %v2089 = vunpack.c.l.b16 %v1954
      %v2090 = vunpack.c.l.b16 %v1955
      %v2091 = vunpack.c.l.b16 %v1956
      %v2092 = vunpack.c.l.b16 %v1957
      %v2093 = vunpack.c.l.b16 %v1958
      %v2094 = vunpack.c.l.b16 %v1959
      %v2095 = vunpack.c.l.b16 %v1960
      %v2096 = vunpack.c.l.b16 %v1961
      %v2097 = vunpack.c.l.b16 %v1962
      %v2098 = vunpack.c.l.b16 %v1963
      %v2099 = vunpack.c.l.b16 %v1964
      %v2100 = vunpack.c.l.b16 %v1965
      %v2101 = vunpack.c.l.b16 %v1966
      %v2102 = vunpack.c.l.b16 %v1967
      %v2103 = vunpack.c.l.b16 %v1968
      %v2104 = vunpack.c.l.b16 %v1969
      %v2105 = vunpack.c.l.b16 %v1970
      %v2106 = vunpack.c.l.b16 %v1971
      %v2107 = vunpack.c.l.b16 %v1972
      %v2108 = vunpack.c.l.b16 %v1973
      %v2109 = vunpack.c.l.b16 %v1974
      %v2110 = vunpack.c.l.b16 %v1975
      %v2111 = vunpack.c.l.b16 %v1976
      %v2112 = vunpack.c.l.b16 %v1977
      %v2113 = vunpack.c.l.b16 %v1978
      %v2114 = vunpack.c.l.b16 %v1979
      %v2115 = vunpack.c.l.b16 %v1980
      %v2116 = vunpack.c.l.b16 %v1981
      %v2117 = vunpack.c.l.b16 %v1982
      %v2118 = vunpack.c.l.b16 %v1983
      %v2119 = vunpack.c.l.b16 %v1984
      %v2120 = vunpack.c.l.b16 %v1985
      %v2121 = vunpack.c.l.b16 %v1986
      %v2122 = vunpack.c.l.b16 %v1987
      %v2123 = vunpack.c.l.b16 %v1988
      %v2124 = vunpack.c.l.b16 %v1989
      %v2125 = vunpack.c.l.b16 %v1990
      %v2126 = vunpack.c.l.b16 %v1991
      %v2127 = vunpack.c.l.b16 %v1992
      %v2128 = vpack.c.b16 %v2065, %v2064
      %v2129 = vpack.c.b16 %v2067, %v2066
      %v2130 = vpack.c.b16 %v2069, %v2068
      %v2131 = vpack.c.b16 %v2071, %v2070
      %v2132 = vpack.c.b16 %v2073, %v2072
      %v2133 = vpack.c.b16 %v2075, %v2074
      %v2134 = vpack.c.b16 %v2077, %v2076
      %v2135 = vpack.c.b16 %v2079, %v2078
      %v2136 = vpack.c.b16 %v2081, %v2080
      %v2137 = vpack.c.b16 %v2083, %v2082
      %v2138 = vpack.c.b16 %v2085, %v2084
      %v2139 = vpack.c.b16 %v2087, %v2086
      %v2140 = vpack.c.b16 %v2089, %v2088
      %v2141 = vpack.c.b16 %v2091, %v2090
      %v2142 = vpack.c.b16 %v2093, %v2092
      %v2143 = vpack.c.b16 %v2095, %v2094
      %v2144 = vpack.c.b16 %v2097, %v2096
      %v2145 = vpack.c.b16 %v2099, %v2098
      %v2146 = vpack.c.b16 %v2101, %v2100
      %v2147 = vpack.c.b16 %v2103, %v2102
      %v2148 = vpack.c.b16 %v2105, %v2104
      %v2149 = vpack.c.b16 %v2107, %v2106
      %v2150 = vpack.c.b16 %v2109, %v2108
      %v2151 = vpack.c.b16 %v2111, %v2110
      %v2152 = vpack.c.b16 %v2113, %v2112
      %v2153 = vpack.c.b16 %v2115, %v2114
      %v2154 = vpack.c.b16 %v2117, %v2116
      %v2155 = vpack.c.b16 %v2119, %v2118
      %v2156 = vpack.c.b16 %v2121, %v2120
      %v2157 = vpack.c.b16 %v2123, %v2122
      %v2158 = vpack.c.b16 %v2125, %v2124
      %v2159 = vpack.c.b16 %v2127, %v2126
      %2192 = vmatprep.subr.bf16.mxu0 0
      %2193 = vmatpush1.bf16.msra.mxu0 %v2128
      %2194 = vmatprep.subr.bf16.mxu0 0
      %2195 = vmatpush1.bf16.msra.mxu0 %v2129
      %2196 = vmatprep.subr.bf16.mxu0 0
      %2197 = vmatpush1.bf16.msra.mxu0 %v2130
      %2198 = vmatprep.subr.bf16.mxu0 0
      %2199 = vmatpush1.bf16.msra.mxu0 %v2131
      %2200 = vmatprep.subr.bf16.mxu0 0
      %2201 = vmatpush1.bf16.msra.mxu0 %v2132
      %2202 = vmatprep.subr.bf16.mxu0 0
      %2203 = vmatpush1.bf16.msra.mxu0 %v2133
      %2204 = vmatprep.subr.bf16.mxu0 0
      %2205 = vmatpush1.bf16.msra.mxu0 %v2134
      %2206 = vmatprep.subr.bf16.mxu0 0
      %2207 = vmatpush1.bf16.msra.mxu0 %v2135
      %2208 = vmatprep.subr.bf16.mxu0 0
      %2209 = vmatpush1.bf16.msra.mxu0 %v2136
      %2210 = vmatprep.subr.bf16.mxu0 0
      %2211 = vmatpush1.bf16.msra.mxu0 %v2137
      %2212 = vmatprep.subr.bf16.mxu0 0
      %2213 = vmatpush1.bf16.msra.mxu0 %v2138
      %2214 = vmatprep.subr.bf16.mxu0 0
      %2215 = vmatpush1.bf16.msra.mxu0 %v2139
      %2216 = vmatprep.subr.bf16.mxu0 0
      %2217 = vmatpush1.bf16.msra.mxu0 %v2140
      %2218 = vmatprep.subr.bf16.mxu0 0
      %2219 = vmatpush1.bf16.msra.mxu0 %v2141
      %2220 = vmatprep.subr.bf16.mxu0 0
      %2221 = vmatpush1.bf16.msra.mxu0 %v2142
      %2222 = vmatprep.subr.bf16.mxu0 0
      %2223 = vmatpush1.bf16.msra.mxu0 %v2143
      %2224 = vmatprep.mubr.bf16.mxu0 %v1579
      %2225 = vmatmul.mubr.bf16.gmra.mrb[0].mxu0 %v1578
      %v2226 = vpop.f32.mrb[0].mxu0
      %v2227 = vadd.f32 %v1998, %v2226
      %v2228 = vpop.f32.mrb[0].mxu0
      %v2229 = vpop.f32.mrb[0].mxu0
      %v2230 = vadd.f32 %v1998, %v2229
      %v2231 = vpop.f32.mrb[0].mxu0
      %2232 = vdwg.mxu0
      %2233 = vmatprep.subr.bf16.mxu0 0
      %2234 = vmatpush1.bf16.msra.mxu0 %v2144
      %2235 = vmatprep.subr.bf16.mxu0 0
      %2236 = vmatpush1.bf16.msra.mxu0 %v2145
      %2237 = vmatprep.subr.bf16.mxu0 0
      %2238 = vmatpush1.bf16.msra.mxu0 %v2146
      %2239 = vmatprep.subr.bf16.mxu0 0
      %2240 = vmatpush1.bf16.msra.mxu0 %v2147
      %2241 = vmatprep.subr.bf16.mxu0 0
      %2242 = vmatpush1.bf16.msra.mxu0 %v2148
      %2243 = vmatprep.subr.bf16.mxu0 0
      %2244 = vmatpush1.bf16.msra.mxu0 %v2149
      %2245 = vmatprep.subr.bf16.mxu0 0
      %2246 = vmatpush1.bf16.msra.mxu0 %v2150
      %2247 = vmatprep.subr.bf16.mxu0 0
      %2248 = vmatpush1.bf16.msra.mxu0 %v2151
      %2249 = vmatprep.subr.bf16.mxu0 0
      %2250 = vmatpush1.bf16.msra.mxu0 %v2152
      %2251 = vmatprep.subr.bf16.mxu0 0
      %2252 = vmatpush1.bf16.msra.mxu0 %v2153
      %2253 = vmatprep.subr.bf16.mxu0 0
      %2254 = vmatpush1.bf16.msra.mxu0 %v2154
      %2255 = vmatprep.subr.bf16.mxu0 0
      %2256 = vmatpush1.bf16.msra.mxu0 %v2155
      %2257 = vmatprep.subr.bf16.mxu0 0
      %2258 = vmatpush1.bf16.msra.mxu0 %v2156
      %2259 = vmatprep.subr.bf16.mxu0 0
      %2260 = vmatpush1.bf16.msra.mxu0 %v2157
      %2261 = vmatprep.subr.bf16.mxu0 0
      %2262 = vmatpush1.bf16.msra.mxu0 %v2158
      %2263 = vmatprep.subr.bf16.mxu0 0
      %2264 = vmatpush1.bf16.msra.mxu0 %v2159
      %2265 = vmatprep.mubr.bf16.mxu0 %v1581
      %2266 = vmatmul.mubr.bf16.gmra.mrb[0].mxu0 %v1580
      %v2267 = vpop.f32.mrb[0].mxu0
      %v2268 = vadd.f32 %v2227, %v2267
      %v2269 = vpop.f32.mrb[0].mxu0
      %v2270 = vpop.f32.mrb[0].mxu0
      %v2271 = vadd.f32 %v2230, %v2270
      %v2272 = vpop.f32.mrb[0].mxu0
      %2273 = vdwg.mxu0
      %v2274 = vxor.u32 %v2268, 2147483648
      %v2275 = vxor.u32 %v2271, 2147483648
      %v2276 = vmul.f32 %v2274, 1.442695
      %v2277 = vpow.pop %v2276
      %v2278 = vmul.f32 %v2275, 1.442695
      %v2279 = vpow.pop %v2278
      %v2280 = vadd.f32 %v2277, 1.0
      %v2281 = vadd.f32 %v2279, 1.0
      %v2282 = vrcp.pop %v2280
      %v2283 = vmul.f32 1.0, %v2282
      %v2284 = vrcp.pop %v2281
      %v2285 = vmul.f32 1.0, %v2284
      %v2286 = vmul.f32 %v1927, %v2283
      %v2287 = vmul.f32 %v1928, %v2285
      %v2288 = vld [vmem:[%s7] sm:$0x1]
      %v2290 = vlaneseq
      %v2291 = vshrl.u32 %v2290, 7
      %v2292 = vsub.s32 0, %v2291
      %v2293 = vrot.slane %v2288, %v2292
      %v2295 = vmul.f32 %v2286, %v2293
      %v2296 = vmul.f32 %v2287, %v2293
      %2297 = vadd.xlane.f32.xlu0 %v2295
      %v2298 = vpop.xlane.xlu0 %2297
      %2299 = vadd.xlane.f32.xlu0 %v2296
      %v2300 = vpop.xlane.xlu0 %2299
      %v2301 = vld [vmem:[#allocation6] sm:$0x1]
      %v2303 = vlaneseq
      %v2304 = vshrl.u32 %v2303, 7
      %v2305 = vsub.s32 0, %v2304
      %v2306 = vrot.slane %v2301, %v2305
      %v2308 = vadd.f32 %v2298, %v2306
      %v2309 = vadd.f32 %v2300, %v2306
      %s2310 = smul.u32 0, 16
      %v2311 = vlaneseq
      %v2312 = vshrl.u32 %v2311, 7
      %v2313 = vadd.s32 %v2312, 8
      %v2314 = vstv %s2310
      %v2315 = vadd.s32 %v2314, %v2312
      %v2316 = vadd.s32 %v2314, %v2313
      %vm2317 = vcmp.lt.s32.totalorder %v2315, 16
      %vm2318 = vcmp.lt.s32.totalorder %v2316, 16
      %v2319 = vsel %vm2317, %v2308, -inf
      %v2320 = vsel %vm2318, %v2309, -inf
      %vm2321 = vcmask 7168
      %v2322 = vsel %vm2321, %v2319, -inf
      %v2323 = vsel %vm2321, %v2320, -inf
      %v2324 = vmax.f32 %v2322, %v2323
      %v2325 = vrot.slane %v2324, 4
      %v2326 = vmax.f32 %v2324, %v2325
      %v2327 = vrot.slane %v2326, 2
      %v2328 = vmax.f32 %v2326, %v2327
      %v2329 = vrot.slane %v2328, 1
      %v2330 = vmax.f32 %v2328, %v2329
      %v2331 = vld [vmem:[#allocation3] sm:$0x1]
      %v2332 = vmax.f32 %v2331, %v2330
      %vm2333 = vcmp.eq.f32.partialorder %v2331, -inf
      %v2334 = vsub.f32 %v2331, %v2332
      %v2335 = vmul.f32 %v2334, 1.442695
      %v2336 = vpow.pop %v2335
      %v2337 = vsel %vm2333, 0.0, %v2336
      %v2339 = vlaneseq
      %v2340 = vshrl.u32 %v2339, 7
      %v2341 = vsub.s32 0, %v2340
      %v2342 = vrot.slane %v2332, %v2341
      %v2344 = vsub.f32 %v2319, %v2342
      %v2345 = vsub.f32 %v2320, %v2342
      %v2346 = vmul.f32 %v2344, 1.442695
      %v2347 = vpow.pop %v2346
      %v2348 = vmul.f32 %v2345, 1.442695
      %v2349 = vpow.pop %v2348
      %v2350 = vld [vmem:[#allocation4] sm:$0x1]
      %v2351 = vmul.f32 %v2337, %v2350
      %v2352 = vsel %vm2321, %v2347, 0.0
      %v2353 = vsel %vm2321, %v2349, 0.0
      %v2354 = vadd.f32 %v2352, %v2353
      %v2355 = vrot.slane %v2354, 4
      %v2356 = vadd.f32 %v2354, %v2355
      %v2357 = vrot.slane %v2356, 2
      %v2358 = vadd.f32 %v2356, %v2357
      %v2359 = vrot.slane %v2358, 1
      %v2360 = vadd.f32 %v2358, %v2359
      %v2361 = vadd.f32 %v2351, %v2360
      %vm2362 = vcmask 0
      %2363 = vst.msk [vmem:[#allocation4] sm:$0x1] %vm2362, %v2361
      %v2364 = vld [vmem:[#allocation5] sm:$0xf]
      %2366 = vset.pattern.permute.xlu0 0
      %2367 = vperm.xlu0 %2366, %v2337
      %v2368 = vpop.permute.xlu0 %2367
      %v2370 = vlaneseq
      %v2371 = vshrl.u32 %v2370, 7
      %v2372 = vsub.s32 0, %v2371
      %v2373 = vrot.slane %v2368, %v2372
      %v2374 = vmul.f32 %v2373, %v2364
      %2376 = vset.pattern.permute.xlu0 0
      %2377 = vperm.xlu0 %2376, %v2347
      %v2378 = vpop.permute.xlu0 %2377
      %2381 = vset.pattern.permute.xlu0 0
      %2382 = vperm.xlu0 %2381, %v2349
      %v2383 = vpop.permute.xlu0 %2382
      %v2385 = vmul.f32 %v2378, %v1570
      %v2386 = vmul.f32 %v2378, %v1571
      %v2387 = vmul.f32 %v2378, %v1572
      %v2388 = vmul.f32 %v2378, %v1573
      %v2389 = vmul.f32 %v2383, %v1574
      %v2390 = vmul.f32 %v2383, %v1575
      %v2391 = vmul.f32 %v2383, %v1576
      %v2392 = vmul.f32 %v2383, %v1577
      %v2393 = vadd.f32 %v2385, %v2389
      %v2394 = vrot.slane %v2393, 4
      %v2395 = vadd.f32 %v2393, %v2394
      %v2396 = vrot.slane %v2395, 2
      %v2397 = vadd.f32 %v2395, %v2396
      %v2398 = vrot.slane %v2397, 1
      %v2399 = vadd.f32 %v2397, %v2398
      %v2400 = vadd.f32 %v2386, %v2390
      %v2401 = vrot.slane %v2400, 4
      %v2402 = vadd.f32 %v2400, %v2401
      %v2403 = vrot.slane %v2402, 2
      %v2404 = vadd.f32 %v2402, %v2403
      %v2405 = vrot.slane %v2404, 1
      %v2406 = vadd.f32 %v2404, %v2405
      %v2407 = vadd.f32 %v2387, %v2391
      %v2408 = vrot.slane %v2407, 4
      %v2409 = vadd.f32 %v2407, %v2408
      %v2410 = vrot.slane %v2409, 2
      %v2411 = vadd.f32 %v2409, %v2410
      %v2412 = vrot.slane %v2411, 1
      %v2413 = vadd.f32 %v2411, %v2412
      %v2414 = vadd.f32 %v2388, %v2392
      %v2415 = vrot.slane %v2414, 4
      %v2416 = vadd.f32 %v2414, %v2415
      %v2417 = vrot.slane %v2416, 2
      %v2418 = vadd.f32 %v2416, %v2417
      %v2419 = vrot.slane %v2418, 1
      %v2420 = vadd.f32 %v2418, %v2419
      %v2425 = vcombine.low %v2399, %v2406
      %v2426 = vcombine.low %v2413, %v2420
      %v2428 = vunpack.c.l.s4 1966171168
      %v2429 = vunpack.c.0.s8 %v2428
      %v2430 = vlaneseq
      %v2431 = vshrl.u32 %v2430, 7
      %v2432 = vsub.s32 %v2429, %v2431
      %v2433 = vrot.slane %v2425, %v2432
      %v2435 = vunpack.c.l.s4 1966171168
      %v2436 = vunpack.c.0.s8 %v2435
      %v2437 = vlaneseq
      %v2438 = vshrl.u32 %v2437, 7
      %v2439 = vsub.s32 %v2436, %v2438
      %v2440 = vrot.slane %v2426, %v2439
      %v2441 = vcombine.low %v2433, %v2440
      %v2443 = vunpack.c.l.s4 1966171168
      %v2444 = vunpack.c.0.s8 %v2443
      %v2445 = vlaneseq
      %v2446 = vshrl.u32 %v2445, 7
      %v2447 = vsub.s32 %v2444, %v2446
      %v2448 = vrot.slane %v2441, %v2447
      %v2450 = vadd.f32 %v2374, %v2448
      %v2451 = vlaneseq
      %vm2452 = vcmp.ge.s32.totalorder %v2451, 0
      %vm2453 = vcmp.lt.s32.totalorder %v2451, 512
      %vm2454 = vmand %vm2452, %vm2453
      %2455 = vst.msk [vmem:[#allocation5] sm:$0xf] %vm2454, %v2450
      %2456 = vst.msk [vmem:[#allocation3] sm:$0x1] %vm2362, %v2332
    $region57: #{mil_gated_attention_forward.1} parent=1 // pred_fallthru
      _
    // Predicated region
    $region58: #{mil_gated_attention_forward.1} parent=1 // pred_check
      _
    $region59: #{mil_gated_attention_forward.1} parent=1 // pred_check_branch
      %2458 = sbr.rel (%p44) target = $region61
    $region60: #{mil_gated_attention_forward.1} parent=1 // pred_region
      %v2459 = vld [vmem:[#allocation5] sm:$0xf]
      %v2460 = vld [vmem:[#allocation4] sm:$0x1]
      %2462 = vset.pattern.permute.xlu0 0
      %2463 = vperm.xlu0 %2462, %v2460
      %v2464 = vpop.permute.xlu0 %2463
      %v2466 = vlaneseq
      %v2467 = vshrl.u32 %v2466, 7
      %v2468 = vsub.s32 0, %v2467
      %v2469 = vrot.slane %v2464, %v2468
      %v2470 = vrcp.pop %v2469
      %v2471 = vmul.f32 %v2459, %v2470
      %v2473 = vlaneseq
      %v2474 = vshrl.u32 %v2473, 7
      %v2475 = vsub.s32 0, %v2474
      %v2476 = vrot.slane %v2471, %v2475
      %v2477 = vlaneseq
      %v2478 = vshrl.u32 %v2477, 7
      %v2479 = vsub.s32 1, %v2478
      %v2480 = vrot.slane %v2471, %v2479
      %v2481 = vlaneseq
      %v2482 = vshrl.u32 %v2481, 7
      %v2483 = vsub.s32 2, %v2482
      %v2484 = vrot.slane %v2471, %v2483
      %v2485 = vlaneseq
      %v2486 = vshrl.u32 %v2485, 7
      %v2487 = vsub.s32 3, %v2486
      %v2488 = vrot.slane %v2471, %v2487
      %v2493 = vpack.c.bf16 %v2476, %v2476
      %v2494 = vpack.c.bf16 %v2480, %v2480
      %v2495 = vpack.c.bf16 %v2484, %v2484
      %v2496 = vpack.c.bf16 %v2488, %v2488
      %v2497 = vld [vmem:[%s9] sm:$0xf]
      %v2498 = vld [vmem:[%s9 + $0x4] sm:$0xf]
      %v2499 = vld [vmem:[%s9 + $0x8] sm:$0xf]
      %v2500 = vld [vmem:[%s9 + $0xc] sm:$0xf]
      %v2501 = vld [vmem:[%s9 + $0x10] sm:$0xf]
      %v2502 = vld [vmem:[%s9 + $0x14] sm:$0xf]
      %v2503 = vld [vmem:[%s9 + $0x18] sm:$0xf]
      %v2504 = vld [vmem:[%s9 + $0x1c] sm:$0xf]
      %v2505 = vld [vmem:[%s9 + $0x20] sm:$0xf]
      %v2506 = vld [vmem:[%s9 + $0x24] sm:$0xf]
      %v2507 = vld [vmem:[%s9 + $0x28] sm:$0xf]
      %v2508 = vld [vmem:[%s9 + $0x2c] sm:$0xf]
      %v2509 = vld [vmem:[%s9 + $0x30] sm:$0xf]
      %v2510 = vld [vmem:[%s9 + $0x34] sm:$0xf]
      %v2511 = vld [vmem:[%s9 + $0x38] sm:$0xf]
      %v2512 = vld [vmem:[%s9 + $0x3c] sm:$0xf]
      %v2513 = vld [vmem:[%s9 + $0x40] sm:$0xf]
      %v2514 = vld [vmem:[%s9 + $0x44] sm:$0xf]
      %v2515 = vld [vmem:[%s9 + $0x48] sm:$0xf]
      %v2516 = vld [vmem:[%s9 + $0x4c] sm:$0xf]
      %v2517 = vld [vmem:[%s9 + $0x50] sm:$0xf]
      %v2518 = vld [vmem:[%s9 + $0x54] sm:$0xf]
      %v2519 = vld [vmem:[%s9 + $0x58] sm:$0xf]
      %v2520 = vld [vmem:[%s9 + $0x5c] sm:$0xf]
      %v2521 = vld [vmem:[%s9 + $0x60] sm:$0xf]
      %v2522 = vld [vmem:[%s9 + $0x64] sm:$0xf]
      %v2523 = vld [vmem:[%s9 + $0x68] sm:$0xf]
      %v2524 = vld [vmem:[%s9 + $0x6c] sm:$0xf]
      %v2525 = vld [vmem:[%s9 + $0x70] sm:$0xf]
      %v2526 = vld [vmem:[%s9 + $0x74] sm:$0xf]
      %v2527 = vld [vmem:[%s9 + $0x78] sm:$0xf]
      %v2528 = vld [vmem:[%s9 + $0x7c] sm:$0xf]
      %v2529 = vld [vmem:[%s9 + $0x80] sm:$0xf]
      %v2530 = vld [vmem:[%s9 + $0x84] sm:$0xf]
      %v2531 = vld [vmem:[%s9 + $0x88] sm:$0xf]
      %v2532 = vld [vmem:[%s9 + $0x8c] sm:$0xf]
      %v2533 = vld [vmem:[%s9 + $0x90] sm:$0xf]
      %v2534 = vld [vmem:[%s9 + $0x94] sm:$0xf]
      %v2535 = vld [vmem:[%s9 + $0x98] sm:$0xf]
      %v2536 = vld [vmem:[%s9 + $0x9c] sm:$0xf]
      %v2537 = vld [vmem:[%s9 + $0xa0] sm:$0xf]
      %v2538 = vld [vmem:[%s9 + $0xa4] sm:$0xf]
      %v2539 = vld [vmem:[%s9 + $0xa8] sm:$0xf]
      %v2540 = vld [vmem:[%s9 + $0xac] sm:$0xf]
      %v2541 = vld [vmem:[%s9 + $0xb0] sm:$0xf]
      %v2542 = vld [vmem:[%s9 + $0xb4] sm:$0xf]
      %v2543 = vld [vmem:[%s9 + $0xb8] sm:$0xf]
      %v2544 = vld [vmem:[%s9 + $0xbc] sm:$0xf]
      %v2545 = vld [vmem:[%s9 + $0xc0] sm:$0xf]
      %v2546 = vld [vmem:[%s9 + $0xc4] sm:$0xf]
      %v2547 = vld [vmem:[%s9 + $0xc8] sm:$0xf]
      %v2548 = vld [vmem:[%s9 + $0xcc] sm:$0xf]
      %v2549 = vld [vmem:[%s9 + $0xd0] sm:$0xf]
      %v2550 = vld [vmem:[%s9 + $0xd4] sm:$0xf]
      %v2551 = vld [vmem:[%s9 + $0xd8] sm:$0xf]
      %v2552 = vld [vmem:[%s9 + $0xdc] sm:$0xf]
      %v2553 = vld [vmem:[%s9 + $0xe0] sm:$0xf]
      %v2554 = vld [vmem:[%s9 + $0xe4] sm:$0xf]
      %v2555 = vld [vmem:[%s9 + $0xe8] sm:$0xf]
      %v2556 = vld [vmem:[%s9 + $0xec] sm:$0xf]
      %v2557 = vld [vmem:[%s9 + $0xf0] sm:$0xf]
      %v2558 = vld [vmem:[%s9 + $0xf4] sm:$0xf]
      %v2559 = vld [vmem:[%s9 + $0xf8] sm:$0xf]
      %v2560 = vld [vmem:[%s9 + $0xfc] sm:$0xf]
      %v2561 = vld [vmem:[%s10] sm:$0x1]
      %v2626 = vunpack.c.l.b16 %v2497
      %v2627 = vunpack.c.l.b16 %v2498
      %v2628 = vunpack.c.l.b16 %v2499
      %v2629 = vunpack.c.l.b16 %v2500
      %v2630 = vunpack.c.l.b16 %v2501
      %v2631 = vunpack.c.l.b16 %v2502
      %v2632 = vunpack.c.l.b16 %v2503
      %v2633 = vunpack.c.l.b16 %v2504
      %v2634 = vunpack.c.l.b16 %v2505
      %v2635 = vunpack.c.l.b16 %v2506
      %v2636 = vunpack.c.l.b16 %v2507
      %v2637 = vunpack.c.l.b16 %v2508
      %v2638 = vunpack.c.l.b16 %v2509
      %v2639 = vunpack.c.l.b16 %v2510
      %v2640 = vunpack.c.l.b16 %v2511
      %v2641 = vunpack.c.l.b16 %v2512
      %v2642 = vunpack.c.l.b16 %v2513
      %v2643 = vunpack.c.l.b16 %v2514
      %v2644 = vunpack.c.l.b16 %v2515
      %v2645 = vunpack.c.l.b16 %v2516
      %v2646 = vunpack.c.l.b16 %v2517
      %v2647 = vunpack.c.l.b16 %v2518
      %v2648 = vunpack.c.l.b16 %v2519
      %v2649 = vunpack.c.l.b16 %v2520
      %v2650 = vunpack.c.l.b16 %v2521
      %v2651 = vunpack.c.l.b16 %v2522
      %v2652 = vunpack.c.l.b16 %v2523
      %v2653 = vunpack.c.l.b16 %v2524
      %v2654 = vunpack.c.l.b16 %v2525
      %v2655 = vunpack.c.l.b16 %v2526
      %v2656 = vunpack.c.l.b16 %v2527
      %v2657 = vunpack.c.l.b16 %v2528
      %v2658 = vunpack.c.l.b16 %v2529
      %v2659 = vunpack.c.l.b16 %v2530
      %v2660 = vunpack.c.l.b16 %v2531
      %v2661 = vunpack.c.l.b16 %v2532
      %v2662 = vunpack.c.l.b16 %v2533
      %v2663 = vunpack.c.l.b16 %v2534
      %v2664 = vunpack.c.l.b16 %v2535
      %v2665 = vunpack.c.l.b16 %v2536
      %v2666 = vunpack.c.l.b16 %v2537
      %v2667 = vunpack.c.l.b16 %v2538
      %v2668 = vunpack.c.l.b16 %v2539
      %v2669 = vunpack.c.l.b16 %v2540
      %v2670 = vunpack.c.l.b16 %v2541
      %v2671 = vunpack.c.l.b16 %v2542
      %v2672 = vunpack.c.l.b16 %v2543
      %v2673 = vunpack.c.l.b16 %v2544
      %v2674 = vunpack.c.l.b16 %v2545
      %v2675 = vunpack.c.l.b16 %v2546
      %v2676 = vunpack.c.l.b16 %v2547
      %v2677 = vunpack.c.l.b16 %v2548
      %v2678 = vunpack.c.l.b16 %v2549
      %v2679 = vunpack.c.l.b16 %v2550
      %v2680 = vunpack.c.l.b16 %v2551
      %v2681 = vunpack.c.l.b16 %v2552
      %v2682 = vunpack.c.l.b16 %v2553
      %v2683 = vunpack.c.l.b16 %v2554
      %v2684 = vunpack.c.l.b16 %v2555
      %v2685 = vunpack.c.l.b16 %v2556
      %v2686 = vunpack.c.l.b16 %v2557
      %v2687 = vunpack.c.l.b16 %v2558
      %v2688 = vunpack.c.l.b16 %v2559
      %v2689 = vunpack.c.l.b16 %v2560
      %v2690 = vpack.c.b16 %v2627, %v2626
      %v2691 = vpack.c.b16 %v2629, %v2628
      %v2692 = vpack.c.b16 %v2631, %v2630
      %v2693 = vpack.c.b16 %v2633, %v2632
      %v2694 = vpack.c.b16 %v2635, %v2634
      %v2695 = vpack.c.b16 %v2637, %v2636
      %v2696 = vpack.c.b16 %v2639, %v2638
      %v2697 = vpack.c.b16 %v2641, %v2640
      %v2698 = vpack.c.b16 %v2643, %v2642
      %v2699 = vpack.c.b16 %v2645, %v2644
      %v2700 = vpack.c.b16 %v2647, %v2646
      %v2701 = vpack.c.b16 %v2649, %v2648
      %v2702 = vpack.c.b16 %v2651, %v2650
      %v2703 = vpack.c.b16 %v2653, %v2652
      %v2704 = vpack.c.b16 %v2655, %v2654
      %v2705 = vpack.c.b16 %v2657, %v2656
      %v2706 = vpack.c.b16 %v2659, %v2658
      %v2707 = vpack.c.b16 %v2661, %v2660
      %v2708 = vpack.c.b16 %v2663, %v2662
      %v2709 = vpack.c.b16 %v2665, %v2664
      %v2710 = vpack.c.b16 %v2667, %v2666
      %v2711 = vpack.c.b16 %v2669, %v2668
      %v2712 = vpack.c.b16 %v2671, %v2670
      %v2713 = vpack.c.b16 %v2673, %v2672
      %v2714 = vpack.c.b16 %v2675, %v2674
      %v2715 = vpack.c.b16 %v2677, %v2676
      %v2716 = vpack.c.b16 %v2679, %v2678
      %v2717 = vpack.c.b16 %v2681, %v2680
      %v2718 = vpack.c.b16 %v2683, %v2682
      %v2719 = vpack.c.b16 %v2685, %v2684
      %v2720 = vpack.c.b16 %v2687, %v2686
      %v2721 = vpack.c.b16 %v2689, %v2688
      %2754 = vmatprep.subr.bf16.mxu0 0
      %2755 = vmatpush1.bf16.msra.mxu0 %v2690
      %2756 = vmatprep.subr.bf16.mxu0 0
      %2757 = vmatpush1.bf16.msra.mxu0 %v2691
      %2758 = vmatprep.subr.bf16.mxu0 0
      %2759 = vmatpush1.bf16.msra.mxu0 %v2692
      %2760 = vmatprep.subr.bf16.mxu0 0
      %2761 = vmatpush1.bf16.msra.mxu0 %v2693
      %2762 = vmatprep.subr.bf16.mxu0 0
      %2763 = vmatpush1.bf16.msra.mxu0 %v2694
      %2764 = vmatprep.subr.bf16.mxu0 0
      %2765 = vmatpush1.bf16.msra.mxu0 %v2695
      %2766 = vmatprep.subr.bf16.mxu0 0
      %2767 = vmatpush1.bf16.msra.mxu0 %v2696
      %2768 = vmatprep.subr.bf16.mxu0 0
      %2769 = vmatpush1.bf16.msra.mxu0 %v2697
      %2770 = vmatprep.subr.bf16.mxu0 0
      %2771 = vmatpush1.bf16.msra.mxu0 %v2698
      %2772 = vmatprep.subr.bf16.mxu0 0
      %2773 = vmatpush1.bf16.msra.mxu0 %v2699
      %2774 = vmatprep.subr.bf16.mxu0 0
      %2775 = vmatpush1.bf16.msra.mxu0 %v2700
      %2776 = vmatprep.subr.bf16.mxu0 0
      %2777 = vmatpush1.bf16.msra.mxu0 %v2701
      %2778 = vmatprep.subr.bf16.mxu0 0
      %2779 = vmatpush1.bf16.msra.mxu0 %v2702
      %2780 = vmatprep.subr.bf16.mxu0 0
      %2781 = vmatpush1.bf16.msra.mxu0 %v2703
      %2782 = vmatprep.subr.bf16.mxu0 0
      %2783 = vmatpush1.bf16.msra.mxu0 %v2704
      %2784 = vmatprep.subr.bf16.mxu0 0
      %2785 = vmatpush1.bf16.msra.mxu0 %v2705
      %2786 = vmatprep.mubr.bf16.mxu0 %v2494
      %2787 = vmatmul.mubr.bf16.gmra.mrb[0].mxu0 %v2493
      %v2788 = vpop.f32.mrb[0].mxu0
      %v2789 = vadd.f32 %v2561, %v2788
      %v2790 = vpop.f32.mrb[0].mxu0
      %v2791 = vpop.f32.mrb[0].mxu0
      %v2792 = vpop.f32.mrb[0].mxu0
      %2793 = vdwg.mxu0
      %2794 = vmatprep.subr.bf16.mxu0 0
      %2795 = vmatpush1.bf16.msra.mxu0 %v2706
      %2796 = vmatprep.subr.bf16.mxu0 0
      %2797 = vmatpush1.bf16.msra.mxu0 %v2707
      %2798 = vmatprep.subr.bf16.mxu0 0
      %2799 = vmatpush1.bf16.msra.mxu0 %v2708
      %2800 = vmatprep.subr.bf16.mxu0 0
      %2801 = vmatpush1.bf16.msra.mxu0 %v2709
      %2802 = vmatprep.subr.bf16.mxu0 0
      %2803 = vmatpush1.bf16.msra.mxu0 %v2710
      %2804 = vmatprep.subr.bf16.mxu0 0
      %2805 = vmatpush1.bf16.msra.mxu0 %v2711
      %2806 = vmatprep.subr.bf16.mxu0 0
      %2807 = vmatpush1.bf16.msra.mxu0 %v2712
      %2808 = vmatprep.subr.bf16.mxu0 0
      %2809 = vmatpush1.bf16.msra.mxu0 %v2713
      %2810 = vmatprep.subr.bf16.mxu0 0
      %2811 = vmatpush1.bf16.msra.mxu0 %v2714
      %2812 = vmatprep.subr.bf16.mxu0 0
      %2813 = vmatpush1.bf16.msra.mxu0 %v2715
      %2814 = vmatprep.subr.bf16.mxu0 0
      %2815 = vmatpush1.bf16.msra.mxu0 %v2716
      %2816 = vmatprep.subr.bf16.mxu0 0
      %2817 = vmatpush1.bf16.msra.mxu0 %v2717
      %2818 = vmatprep.subr.bf16.mxu0 0
      %2819 = vmatpush1.bf16.msra.mxu0 %v2718
      %2820 = vmatprep.subr.bf16.mxu0 0
      %2821 = vmatpush1.bf16.msra.mxu0 %v2719
      %2822 = vmatprep.subr.bf16.mxu0 0
      %2823 = vmatpush1.bf16.msra.mxu0 %v2720
      %2824 = vmatprep.subr.bf16.mxu0 0
      %2825 = vmatpush1.bf16.msra.mxu0 %v2721
      %2826 = vmatprep.mubr.bf16.mxu0 %v2496
      %2827 = vmatmul.mubr.bf16.gmra.mrb[0].mxu0 %v2495
      %v2828 = vpop.f32.mrb[0].mxu0
      %v2829 = vadd.f32 %v2789, %v2828
      %v2830 = vpop.f32.mrb[0].mxu0
      %v2831 = vpop.f32.mrb[0].mxu0
      %v2832 = vpop.f32.mrb[0].mxu0
      %2833 = vdwg.mxu0
      %2834 = vst [vmem:[#allocation7] sm:$0x1] %v2829
    $region61: #{mil_gated_attention_forward.1} parent=1 // pred_fallthru
      _
    // Predicated region
    $region62: #{mil_gated_attention_forward.1} parent=1 // pred_check
      _
    $region63: #{mil_gated_attention_forward.1} parent=1 // pred_check_branch
      %2836 = sbr.rel (0) target = $region65
    $region64: #{mil_gated_attention_forward.1} parent=1 // pred_region
      %s2838 = ssub.s32 16, 16
      %2839 = vsyncadd [#allocation8], %s2838
      %s2841 = sshll.u32 [#allocation7], 4
      %s2842 = int_to_ptr.vmem [resolvable:$true] %s2841
      %2844 = dma.vmem_to_hbm [thread:$0]  %s2842, 16, %s11, [#allocation8]
    $region65: #{mil_gated_attention_forward.1} parent=1 // pred_fallthru
      _
    // Predicated region
    $region66: #{mil_gated_attention_forward.1} parent=1 // pred_check
      _
    $region67: #{mil_gated_attention_forward.1} parent=1 // pred_check_branch
      %2846 = sbr.rel (0) target = $region69
    $region68: #{mil_gated_attention_forward.1} parent=1 // pred_region
      %2847 = dma.done [#allocation8], 16
    $region69: #{mil_gated_attention_forward.1} parent=1 // pred_fallthru
      _
    %2848 = vsyncpa [#allocation8], 1

</llo_original>
